<compile_context>
chip_gen: v7x
topology: tpu7x:2x2x1
jax: 0.10.0
libtpu: 0.0.40
codegen_flags: <defaults>
</compile_context>

<pallas_src>
import jax
import jax.numpy as jnp
import numpy as np
from jax.experimental import pallas as pl
from jax.experimental.pallas import tpu as pltpu

# ----------------------------- model hyper-params (small, synthetic) --------
B = 2            # batch                  (TRAIN_BATCH_SIZE)
L = 16           # sequence length        (stand-in for MAX_LEN=1024)
D = 32           # hidden size            (stand-in for 768)
C = 8            # num_classes (out_num_caps) -> N = 128: lane-dense routing state
O = 16           # out_dim_caps
N = C * O        # packed out-capsule axis, n = c*O + o
ROUTINGS = 3
EPS = 1e-8
VOCAB = 100

# L-tile streamed per grid step.  Toy value here; real-size guidance
# (L=1024, D=768, int8 W stream, double-buffered input blocks):
#   v5e/v6e (128 MiB VMEM):       LT = 256,    vmem_limit_bytes ~ 110 MiB
#   v7x     ( 64 MiB VMEM / TC):  LT = 96-128, vmem_limit_bytes ~  56 MiB
# At B large enough to leave the memory-bound regime, split the L axis across v7x's
# two TensorCores (half the x_hat scratch each, merge partial routing sums) rather
# than duplicating the W stream -- not done here (B=2 is deep in the HBM-bound regime).
LT = 8
assert L % LT == 0

# Explicit scoped-VMEM limit (review item).  At these toy sizes the real footprint is
# well under 1 MiB; 32 MiB is a safe explicit setting on every TPU generation.
_VMEM_LIMIT_BYTES = 32 * 1024 * 1024


# ----------------------------- weight quantization (wrapper-side, shared) ---
def _pack_and_quantize_w(caps_weight):
    """(C, L, O, D) f32 -> (L, N, D) int8 + (L, N) f32 per-(l, n) scales."""
    w_lnd = jnp.transpose(caps_weight, (1, 0, 2, 3)).reshape(L, N, D)
    amax = jnp.max(jnp.abs(w_lnd), axis=-1, keepdims=True)            # (L, N, 1)
    scale = jnp.maximum(amax, 1e-6) / 127.0
    w_q = jnp.clip(jnp.round(w_lnd / scale), -127, 127).astype(jnp.int8)
    return w_q, scale[..., 0].astype(jnp.float32)


# ----------------------------- Pallas kernel --------------------------------
def capsule_mood_kernel(x_ref, wq_ref, ws_ref, e_ref, et_ref, sel_ref, selt_ref,
                        out_ref, xhat_ref, s0_ref):
    """One L-tile per grid step; the full batch stays inside every block.

    x_ref   : (LT, B, D)   bf16  encoder hidden states, one sequence tile
    wq_ref  : (LT, N, D)   int8  quantized capsule weight tile, n = c*O + o
    ws_ref  : (LT, N)      f32   per-(l, n) dequantization scales
    e_ref   : (C, N)       f32   one-hot expand matrix  E[c, c*O+o] = 1
    et_ref  : (N, C)       f32   E^T (precomputed; no in-kernel transpose)
    sel_ref : (B, L*B)     f32   Sel[b, l*B+b] = 1  (segment-sum over l per b)
    selt_ref: (L*B, B)     f32   Sel^T             (broadcast per-b vectors to rows)
    out_ref : (B, C)       f32   class-capsule norms (written on the last tile only)
    xhat_ref: (L*B, N)     f32   lane-dense x_hat scratch, row r = l*B + b
    s0_ref  : (B, N)       f32   running sum_l x_hat for routing iteration 0
    """
    lt = pl.program_id(0)
    r0 = pl.multiple_of(lt * (LT * B), LT * B)

    # --- utils.squash over the hidden dim (exact f32) ------------------------
    x = x_ref[...].astype(jnp.float32)                        # (LT, B, D)
    sq = jnp.sum(x * x, axis=-1, keepdims=True)               # (LT, B, 1)
    u = (sq / (1.0 + sq)) * x / (jnp.sqrt(sq) + EPS)

    # --- x_hat tile on the MXU: contract over D (bf16 in, f32 accumulate) ----
    # x_hat[l, b, n] = (sum_d u[l,b,d] * Wq[l,n,d]) * scale[l,n]
    w = wq_ref[...].astype(jnp.float32).astype(jnp.bfloat16)  # int8 -> bf16 (exact)
    xh = jnp.einsum("lbd,lnd->lbn", u.astype(jnp.bfloat16), w,
                    preferred_element_type=jnp.float32)       # (LT, B, N) f32
    xh = xh * ws_ref[...][:, None, :]                         # dequantize on output

    # --- accumulate iteration-0's sum_l x_hat while the W DMA stream is live -
    @pl.when(lt == 0)
    def _():
        s0_ref[...] = jnp.zeros_like(s0_ref)
    s0_ref[...] += jnp.sum(xh, axis=0)                        # (B, N)

    # --- park this tile's x_hat, flattened row-major as r = l*B + b ----------
    xhat_ref[pl.ds(r0, LT * B), :] = xh.reshape(LT * B, N)

    # --- dynamic routing + norm once every x_hat tile is resident ------------
    @pl.when(lt == pl.num_programs(0) - 1)
    def _():
        xf = xhat_ref[...]                                    # (L*B, N)
        E = e_ref[...]                                        # (C, N)
        Et = et_ref[...]                                      # (N, C)
        sel = sel_ref[...]                                    # (B, L*B)
        selt = selt_ref[...]                                  # (L*B, B)

        def squash_caps(s):                                   # s: (B, N)
            sn = jnp.dot(s * s, Et, preferred_element_type=jnp.float32)   # (B, C)
            sn_e = jnp.dot(sn, E, preferred_element_type=jnp.float32)     # (B, N)
            return s * (sn_e / (1.0 + sn_e)) / (jnp.sqrt(sn_e) + EPS)

        # iteration 0: b_logits == 0, so the coupling is exactly the constant 1/C
        s = s0_ref[...] * (1.0 / C)                           # (B, N)
        v = squash_caps(s)
        v_rows = jnp.dot(selt, v, preferred_element_type=jnp.float32)     # (L*B, N)
        b_logits = jnp.dot(v_rows * xf, Et,
                           preferred_element_type=jnp.float32)            # (L*B, C)

        for it in range(1, ROUTINGS):
            m = jnp.max(b_logits, axis=-1, keepdims=True)
            ex = jnp.exp(b_logits - m)
            coup = ex / jnp.sum(ex, axis=-1, keepdims=True)               # (L*B, C)
            coup_e = jnp.dot(coup, E, preferred_element_type=jnp.float32) # (L*B, N)
            s = jnp.dot(sel, coup_e * xf,
                        preferred_element_type=jnp.float32)               # (B, N)
            v = squash_caps(s)
            if it < ROUTINGS - 1:
                v_rows = jnp.dot(selt, v, preferred_element_type=jnp.float32)
                b_logits = b_logits + jnp.dot(v_rows * xf, Et,
                                              preferred_element_type=jnp.float32)

        # classvecs.norm(dim=-1)
        out_ref[...] = jnp.sqrt(jnp.dot(v * v, Et,
                                        preferred_element_type=jnp.float32))  # (B, C)


# ----------------------------- wrapper ---------------------------------------
def capsule_mood_forward(hidden_states, caps_weight):
    """hidden_states: (B, L, D) f32, caps_weight: (C, L, O, D) f32 -> (B, C) f32."""
    # Layout / dtype plumbing, done ONCE outside the kernel (plain XLA):
    #   * sequence axis leading (no in-kernel transpose of the streamed activations)
    #   * hidden states streamed as bf16 (halves the secondary HBM stream)
    #   * capsule weight packed to (L, N, D), quantized to int8 + per-(l,n) scales
    x_lbd = jnp.swapaxes(hidden_states, 0, 1).astype(jnp.bfloat16)       # (L, B, D)
    w_q, w_scale = _pack_and_quantize_w(caps_weight)                     # int8 / f32

    # Tiny constant matrices so every capsule expand/reduce is a 2-D MXU matmul.
    n_idx = jnp.arange(N)
    expand = (n_idx[None, :] // O == jnp.arange(C)[:, None]).astype(jnp.float32)  # (C, N)
    expand_t = expand.T                                                           # (N, C)
    r_idx = jnp.arange(L * B)
    sel = (r_idx[None, :] % B == jnp.arange(B)[:, None]).astype(jnp.float32)      # (B, L*B)
    sel_t = sel.T                                                                 # (L*B, B)

    return pl.pallas_call(
        capsule_mood_kernel,
        out_shape=jax.ShapeDtypeStruct((B, C), jnp.float32),
        grid_spec=pltpu.PrefetchScalarGridSpec(
            num_scalar_prefetch=0,
            grid=(L // LT,),
            in_specs=[
                pl.BlockSpec((LT, B, D), lambda l: (l, 0, 0)),   # hidden tile (bf16)
                pl.BlockSpec((LT, N, D), lambda l: (l, 0, 0)),   # W tile (int8)
                pl.BlockSpec((LT, N), lambda l: (l, 0)),         # W scales (f32)
                pl.BlockSpec((C, N), lambda l: (0, 0)),          # E
                pl.BlockSpec((N, C), lambda l: (0, 0)),          # E^T
                pl.BlockSpec((B, L * B), lambda l: (0, 0)),      # Sel
                pl.BlockSpec((L * B, B), lambda l: (0, 0)),      # Sel^T
            ],
            out_specs=pl.BlockSpec((B, C), lambda l: (0, 0)),
            scratch_shapes=[
                pltpu.VMEM((L * B, N), jnp.float32),             # lane-dense x_hat
                pltpu.VMEM((B, N), jnp.float32),                 # iteration-0 sum
            ],
        ),
        # Single sequential grid axis: it carries the resident x_hat / s0 scratch and
        # out_ref is written only on the last step -- do NOT mark it parallel or split
        # it across v7x cores without also merging per-core partial routing state.
        compiler_params=pltpu.CompilerParams(
            dimension_semantics=("arbitrary",),
            vmem_limit_bytes=_VMEM_LIMIT_BYTES),
    )(x_lbd, w_q, w_scale, expand, expand_t, sel, sel_t)


# ----------------------------- encoder stand-in (plain JAX glue) ------------
def fake_xlnet_encoder(input_ids, attention_mask, emb_table, proj_w, proj_b):
    # TODO(synk): XLNetModel.from_pretrained(...) transformer stack is not implemented;
    #             deterministic embedding + tanh(linear) used as a stand-in encoder.
    h = emb_table[input_ids]                       # (B, L, D)
    h = jnp.tanh(h @ proj_w + proj_b)              # (B, L, D)
    return h * attention_mask[..., None]


# ----------------------------- pure-JAX reference (for sanity check) --------
def reference_forward(hidden_states, caps_weight):
    """Mirrors the kernel's input quantization (bf16 hidden stream, bf16 u on the MXU,
    int8 + per-(l,n)-scale W) so the assert measures the kernel itself; squash /
    routing math is exact f32, as in the kernel."""
    x = hidden_states.astype(jnp.bfloat16).astype(jnp.float32)          # bf16 stream
    sq = jnp.sum(x * x, axis=-1, keepdims=True)
    u = (sq / (1.0 + sq)) * x / (jnp.sqrt(sq) + EPS)                    # (B, L, D)
    u_q = u.astype(jnp.bfloat16).astype(jnp.float32)

    w_q, w_scale = _pack_and_quantize_w(caps_weight)                    # (L,N,D),(L,N)
    x_hat = jnp.einsum("lnd,bld->bln", w_q.astype(jnp.float32), u_q,
                       precision=jax.lax.Precision.HIGHEST)             # (B, L, N)
    x_hat = x_hat * w_scale[None]
    x_hat = x_hat.reshape(B, L, C, O).transpose(0, 2, 1, 3)             # (B, C, L, O)

    b_logits = jnp.zeros((B, C, L), dtype=jnp.float32)
    v = None
    for it in range(ROUTINGS):
        coup = jax.nn.softmax(b_logits, axis=1)
        s = jnp.sum(coup[..., None] * x_hat, axis=2)                    # (B, C, O)
        sn = jnp.sum(s * s, axis=-1, keepdims=True)
        v = (sn / (1.0 + sn)) * s / (jnp.sqrt(sn) + EPS)
        if it < ROUTINGS - 1:
            b_logits = b_logits + jnp.sum(v[:, :, None, :] * x_hat, axis=-1)
    return jnp.linalg.norm(v, axis=-1)                                  # (B, C)


# ----------------------------- main ------------------------------------------
if __name__ == "__main__":
    key = jax.random.PRNGKey(0)
    k_emb, k_pw, k_pb, k_caps, k_ids = jax.random.split(key, 5)

    # deterministic "parameters"
    emb_table = 0.1 * jax.random.normal(k_emb, (VOCAB, D), dtype=jnp.float32)
    proj_w = 0.1 * jax.random.normal(k_pw, (D, D), dtype=jnp.float32)
    proj_b = 0.01 * jax.random.normal(k_pb, (D,), dtype=jnp.float32)
    caps_weight = jax.random.normal(k_caps, (C, L, O, D), dtype=jnp.float32)

    # deterministic inputs
    input_ids = jax.random.randint(k_ids, (B, L), 0, VOCAB)
    attention_mask = jnp.ones((B, L), dtype=jnp.float32)

    hidden = fake_xlnet_encoder(input_ids, attention_mask, emb_table, proj_w, proj_b)
    hidden = hidden.astype(jnp.float32)

    out = jax.block_until_ready(capsule_mood_forward(hidden, caps_weight))
    ref = jax.block_until_ready(reference_forward(hidden, caps_weight))

    # int8 W + bf16 activations are mirrored in the reference, and routing math is
    # exact f32 in both -> only MXU vs XLA accumulation order differs.
    np.testing.assert_allclose(np.asarray(out), np.asarray(ref), rtol=1e-2, atol=1e-3)

    print("KERNEL_OK")
</pallas_src>

<mosaic_0001>
module attributes {stable_mosaic.version = 11 : i64} {
  func.func @capsule_mood_kernel(%arg0: i32, %arg1: memref<8x2x32xbf16, #tpu.memory_space<vmem>>, %arg2: memref<8x128x32xi8, #tpu.memory_space<vmem>>, %arg3: memref<8x128xf32, #tpu.memory_space<vmem>>, %arg4: memref<8x128xf32, #tpu.memory_space<vmem>>, %arg5: memref<128x8xf32, #tpu.memory_space<vmem>>, %arg6: memref<2x32xf32, #tpu.memory_space<vmem>>, %arg7: memref<32x2xf32, #tpu.memory_space<vmem>>, %arg8: memref<2x8xf32, #tpu.memory_space<vmem>>, %arg9: memref<32x128xf32, #tpu.memory_space<vmem>>, %arg10: memref<2x128xf32, #tpu.memory_space<vmem>>) attributes {dimension_semantics = [#tpu.dimension_semantics<arbitrary>], iteration_bounds = array<i64: 2>, scalar_prefetch = 0 : i64, scratch_operands = 2 : i64, tpu.core_type = #tpu.core_type<tc>, window_params = [{transform_indices = @transform_0, window_bounds = array<i64: 8, 2, 32>}, {transform_indices = @transform_1, window_bounds = array<i64: 8, 128, 32>}, {transform_indices = @transform_2, window_bounds = array<i64: 8, 128>}, {pipeline_mode = #tpu.pipeline_mode<synchronous>, transform_indices = @transform_3, window_bounds = array<i64: 8, 128>}, {pipeline_mode = #tpu.pipeline_mode<synchronous>, transform_indices = @transform_4, window_bounds = array<i64: 128, 8>}, {pipeline_mode = #tpu.pipeline_mode<synchronous>, transform_indices = @transform_5, window_bounds = array<i64: 2, 32>}, {pipeline_mode = #tpu.pipeline_mode<synchronous>, transform_indices = @transform_6, window_bounds = array<i64: 32, 2>}, {pipeline_mode = #tpu.pipeline_mode<synchronous>, transform_indices = @transform_7, window_bounds = array<i64: 2, 8>}]} {
    %c16_i32 = arith.constant 16 : i32
    %0 = arith.muli %arg0, %c16_i32 : i32
    %1 = tpu.assume_multiple %0, 16 : i32
    %c0 = arith.constant 0 : index
    %c0_0 = arith.constant 0 : index
    %c0_1 = arith.constant 0 : index
    %2 = vector.load %arg1[%c0, %c0_0, %c0_1] : memref<8x2x32xbf16, #tpu.memory_space<vmem>>, vector<8x2x32xbf16>
    %3 = arith.extf %2 : vector<8x2x32xbf16> to vector<8x2x32xf32>
    %4 = arith.mulf %3, %3 : vector<8x2x32xf32>
    %cst = arith.constant dense<0.000000e+00> : vector<8x2xf32>
    %5 = vector.multi_reduction <add>, %4, %cst [2] : vector<8x2x32xf32> to vector<8x2xf32>
    %6 = vector.shape_cast %5 : vector<8x2xf32> to vector<8x2x1xf32>
    %cst_2 = arith.constant 1.000000e+00 : f32
    %7 = vector.broadcast %cst_2 : f32 to vector<8x2x1xf32>
    %8 = arith.addf %7, %6 : vector<8x2x1xf32>
    %9 = arith.divf %6, %8 : vector<8x2x1xf32>
    %10 = vector.broadcast %9 : vector<8x2x1xf32> to vector<8x2x32xf32>
    %11 = arith.mulf %10, %3 : vector<8x2x32xf32>
    %12 = math.sqrt %6 : vector<8x2x1xf32>
    %cst_3 = arith.constant 9.99999993E-9 : f32
    %13 = vector.broadcast %cst_3 : f32 to vector<8x2x1xf32>
    %14 = arith.addf %12, %13 : vector<8x2x1xf32>
    %15 = vector.broadcast %14 : vector<8x2x1xf32> to vector<8x2x32xf32>
    %16 = arith.divf %11, %15 : vector<8x2x32xf32>
    %c0_4 = arith.constant 0 : index
    %c0_5 = arith.constant 0 : index
    %c0_6 = arith.constant 0 : index
    %17 = vector.load %arg2[%c0_4, %c0_5, %c0_6] : memref<8x128x32xi8, #tpu.memory_space<vmem>>, vector<8x128x32xi8>
    %18 = arith.sitofp %17 : vector<8x128x32xi8> to vector<8x128x32xf32>
    %19 = arith.truncf %18 : vector<8x128x32xf32> to vector<8x128x32xbf16>
    %20 = arith.truncf %16 : vector<8x2x32xf32> to vector<8x2x32xbf16>
    "tpu.trace_start"() <{level = 10 : i32, message = "lbd,lnd->lbn"}> : () -> ()
    %cst_7 = arith.constant dense<0.000000e+00> : vector<8x2x128xf32>
    %21 = tpu.matmul %20, %19, %cst_7 {dimension_numbers = #tpu.dot_dimension_numbers<[2], [2], [1], [1], [0, 0, 0, 1, 1, 1], [0], [0]>} : vector<8x2x32xbf16>, vector<8x128x32xbf16>, vector<8x2x128xf32> -> vector<8x2x128xf32>
    "tpu.trace_stop"() : () -> ()
    %c0_8 = arith.constant 0 : index
    %c0_9 = arith.constant 0 : index
    %22 = vector.load %arg3[%c0_8, %c0_9] : memref<8x128xf32, #tpu.memory_space<vmem>>, vector<8x128xf32>
    %23 = vector.shape_cast %22 : vector<8x128xf32> to vector<8x1x128xf32>
    %24 = vector.broadcast %23 : vector<8x1x128xf32> to vector<8x2x128xf32>
    %25 = arith.mulf %21, %24 : vector<8x2x128xf32>
    %c0_i32 = arith.constant 0 : i32
    %26 = arith.cmpi eq, %arg0, %c0_i32 : i32
    %27 = arith.extui %26 : i1 to i32
    %c0_i32_10 = arith.constant 0 : i32
    %28 = arith.cmpi ne, %27, %c0_i32_10 : i32
    scf.if %28 {
      %cst_18 = arith.constant 0.000000e+00 : f32
      %39 = vector.broadcast %cst_18 : f32 to vector<2x128xf32>
      %c0_19 = arith.constant 0 : index
      %c0_20 = arith.constant 0 : index
      %40 = vector.load %arg10[%c0_19, %c0_20] : memref<2x128xf32, #tpu.memory_space<vmem>>, vector<2x128xf32>
      tpu.vector_store %arg10[%c0_19, %c0_20], %39 {strides = array<i32>} : memref<2x128xf32, #tpu.memory_space<vmem>>, vector<2x128xf32>,
    } else {
    }
    %c0_11 = arith.constant 0 : index
    %c0_12 = arith.constant 0 : index
    %29 = vector.load %arg10[%c0_11, %c0_12] : memref<2x128xf32, #tpu.memory_space<vmem>>, vector<2x128xf32>
    %cst_13 = arith.constant dense<0.000000e+00> : vector<2x128xf32>
    %30 = vector.multi_reduction <add>, %25, %cst_13 [0] : vector<8x2x128xf32> to vector<2x128xf32>
    %31 = arith.addf %29, %30 : vector<2x128xf32>
    %c0_14 = arith.constant 0 : index
    %c0_15 = arith.constant 0 : index
    %32 = vector.load %arg10[%c0_14, %c0_15] : memref<2x128xf32, #tpu.memory_space<vmem>>, vector<2x128xf32>
    tpu.vector_store %arg10[%c0_14, %c0_15], %31 {strides = array<i32>} : memref<2x128xf32, #tpu.memory_space<vmem>>, vector<2x128xf32>,
    %33 = vector.shape_cast %25 : vector<8x2x128xf32> to vector<16x128xf32>
    %34 = arith.index_cast %1 : i32 to index
    %c0_16 = arith.constant 0 : index
    %35 = vector.load %arg9[%34, %c0_16] : memref<32x128xf32, #tpu.memory_space<vmem>>, vector<16x128xf32>
    tpu.vector_store %arg9[%34, %c0_16], %33 {strides = array<i32>} : memref<32x128xf32, #tpu.memory_space<vmem>>, vector<16x128xf32>,
    %c1_i32 = arith.constant 1 : i32
    %36 = arith.cmpi eq, %arg0, %c1_i32 : i32
    %37 = arith.extui %36 : i1 to i32
    %c0_i32_17 = arith.constant 0 : i32
    %38 = arith.cmpi ne, %37, %c0_i32_17 : i32
    scf.if %38 {
      %c0_18 = arith.constant 0 : index
      %c0_19 = arith.constant 0 : index
      %39 = vector.load %arg9[%c0_18, %c0_19] : memref<32x128xf32, #tpu.memory_space<vmem>>, vector<32x128xf32>
      %c0_20 = arith.constant 0 : index
      %c0_21 = arith.constant 0 : index
      %40 = vector.load %arg4[%c0_20, %c0_21] : memref<8x128xf32, #tpu.memory_space<vmem>>, vector<8x128xf32>
      %c0_22 = arith.constant 0 : index
      %c0_23 = arith.constant 0 : index
      %41 = vector.load %arg5[%c0_22, %c0_23] : memref<128x8xf32, #tpu.memory_space<vmem>>, vector<128x8xf32>
      %c0_24 = arith.constant 0 : index
      %c0_25 = arith.constant 0 : index
      %42 = vector.load %arg6[%c0_24, %c0_25] : memref<2x32xf32, #tpu.memory_space<vmem>>, vector<2x32xf32>
      %c0_26 = arith.constant 0 : index
      %c0_27 = arith.constant 0 : index
      %43 = vector.load %arg7[%c0_26, %c0_27] : memref<32x2xf32, #tpu.memory_space<vmem>>, vector<32x2xf32>
      %c0_28 = arith.constant 0 : index
      %c0_29 = arith.constant 0 : index
      %44 = vector.load %arg10[%c0_28, %c0_29] : memref<2x128xf32, #tpu.memory_space<vmem>>, vector<2x128xf32>
      %cst_30 = arith.constant 1.250000e-01 : f32
      %45 = vector.broadcast %cst_30 : f32 to vector<2x128xf32>
      %46 = arith.mulf %44, %45 : vector<2x128xf32>
      %47 = arith.mulf %46, %46 : vector<2x128xf32>
      %cst_31 = arith.constant dense<0.000000e+00> : vector<2x8xf32>
      %48 = tpu.matmul %47, %41, %cst_31 {dimension_numbers = #tpu.dot_dimension_numbers<[1], [0], [0], [1], [0, 0, 1, 1], [], []>} : vector<2x128xf32>, vector<128x8xf32>, vector<2x8xf32> -> vector<2x8xf32>
      %cst_32 = arith.constant dense<0.000000e+00> : vector<2x128xf32>
      %49 = tpu.matmul %48, %40, %cst_32 {dimension_numbers = #tpu.dot_dimension_numbers<[1], [0], [0], [1], [0, 0, 1, 1], [], []>} : vector<2x8xf32>, vector<8x128xf32>, vector<2x128xf32> -> vector<2x128xf32>
      %cst_33 = arith.constant 1.000000e+00 : f32
      %50 = vector.broadcast %cst_33 : f32 to vector<2x128xf32>
      %51 = arith.addf %50, %49 : vector<2x128xf32>
      %52 = arith.divf %49, %51 : vector<2x128xf32>
      %53 = arith.mulf %46, %52 : vector<2x128xf32>
      %54 = math.sqrt %49 : vector<2x128xf32>
      %cst_34 = arith.constant 9.99999993E-9 : f32
      %55 = vector.broadcast %cst_34 : f32 to vector<2x128xf32>
      %56 = arith.addf %54, %55 : vector<2x128xf32>
      %57 = arith.divf %53, %56 : vector<2x128xf32>
      %cst_35 = arith.constant dense<0.000000e+00> : vector<32x128xf32>
      %58 = tpu.matmul %43, %57, %cst_35 {dimension_numbers = #tpu.dot_dimension_numbers<[1], [0], [0], [1], [0, 0, 1, 1], [], []>} : vector<32x2xf32>, vector<2x128xf32>, vector<32x128xf32> -> vector<32x128xf32>
      %59 = arith.mulf %58, %39 : vector<32x128xf32>
      %cst_36 = arith.constant dense<0.000000e+00> : vector<32x8xf32>
      %60 = tpu.matmul %59, %41, %cst_36 {dimension_numbers = #tpu.dot_dimension_numbers<[1], [0], [0], [1], [0, 0, 1, 1], [], []>} : vector<32x128xf32>, vector<128x8xf32>, vector<32x8xf32> -> vector<32x8xf32>
      %cst_37 = arith.constant dense<0xFF800000> : vector<32xf32>
      %61 = vector.multi_reduction <maximumf>, %60, %cst_37 [1] : vector<32x8xf32> to vector<32xf32>
      %62 = vector.shape_cast %61 : vector<32xf32> to vector<32x1xf32>
      %63 = vector.broadcast %62 : vector<32x1xf32> to vector<32x8xf32>
      %64 = arith.subf %60, %63 : vector<32x8xf32>
      %65 = math.exp %64 : vector<32x8xf32>
      %cst_38 = arith.constant dense<0.000000e+00> : vector<32xf32>
      %66 = vector.multi_reduction <add>, %65, %cst_38 [1] : vector<32x8xf32> to vector<32xf32>
      %67 = vector.shape_cast %66 : vector<32xf32> to vector<32x1xf32>
      %68 = vector.broadcast %67 : vector<32x1xf32> to vector<32x8xf32>
      %69 = arith.divf %65, %68 : vector<32x8xf32>
      %cst_39 = arith.constant dense<0.000000e+00> : vector<32x128xf32>
      %70 = tpu.matmul %69, %40, %cst_39 {dimension_numbers = #tpu.dot_dimension_numbers<[1], [0], [0], [1], [0, 0, 1, 1], [], []>} : vector<32x8xf32>, vector<8x128xf32>, vector<32x128xf32> -> vector<32x128xf32>
      %71 = arith.mulf %70, %39 : vector<32x128xf32>
      %cst_40 = arith.constant dense<0.000000e+00> : vector<2x128xf32>
      %72 = tpu.matmul %42, %71, %cst_40 {dimension_numbers = #tpu.dot_dimension_numbers<[1], [0], [0], [1], [0, 0, 1, 1], [], []>} : vector<2x32xf32>, vector<32x128xf32>, vector<2x128xf32> -> vector<2x128xf32>
      %73 = arith.mulf %72, %72 : vector<2x128xf32>
      %cst_41 = arith.constant dense<0.000000e+00> : vector<2x8xf32>
      %74 = tpu.matmul %73, %41, %cst_41 {dimension_numbers = #tpu.dot_dimension_numbers<[1], [0], [0], [1], [0, 0, 1, 1], [], []>} : vector<2x128xf32>, vector<128x8xf32>, vector<2x8xf32> -> vector<2x8xf32>
      %cst_42 = arith.constant dense<0.000000e+00> : vector<2x128xf32>
      %75 = tpu.matmul %74, %40, %cst_42 {dimension_numbers = #tpu.dot_dimension_numbers<[1], [0], [0], [1], [0, 0, 1, 1], [], []>} : vector<2x8xf32>, vector<8x128xf32>, vector<2x128xf32> -> vector<2x128xf32>
      %cst_43 = arith.constant 1.000000e+00 : f32
      %76 = vector.broadcast %cst_43 : f32 to vector<2x128xf32>
      %77 = arith.addf %76, %75 : vector<2x128xf32>
      %78 = arith.divf %75, %77 : vector<2x128xf32>
      %79 = arith.mulf %72, %78 : vector<2x128xf32>
      %80 = math.sqrt %75 : vector<2x128xf32>
      %cst_44 = arith.constant 9.99999993E-9 : f32
      %81 = vector.broadcast %cst_44 : f32 to vector<2x128xf32>
      %82 = arith.addf %80, %81 : vector<2x128xf32>
      %83 = arith.divf %79, %82 : vector<2x128xf32>
      %cst_45 = arith.constant dense<0.000000e+00> : vector<32x128xf32>
      %84 = tpu.matmul %43, %83, %cst_45 {dimension_numbers = #tpu.dot_dimension_numbers<[1], [0], [0], [1], [0, 0, 1, 1], [], []>} : vector<32x2xf32>, vector<2x128xf32>, vector<32x128xf32> -> vector<32x128xf32>
      %85 = arith.mulf %84, %39 : vector<32x128xf32>
      %cst_46 = arith.constant dense<0.000000e+00> : vector<32x8xf32>
      %86 = tpu.matmul %85, %41, %cst_46 {dimension_numbers = #tpu.dot_dimension_numbers<[1], [0], [0], [1], [0, 0, 1, 1], [], []>} : vector<32x128xf32>, vector<128x8xf32>, vector<32x8xf32> -> vector<32x8xf32>
      %87 = arith.addf %60, %86 : vector<32x8xf32>
      %cst_47 = arith.constant dense<0xFF800000> : vector<32xf32>
      %88 = vector.multi_reduction <maximumf>, %87, %cst_47 [1] : vector<32x8xf32> to vector<32xf32>
      %89 = vector.shape_cast %88 : vector<32xf32> to vector<32x1xf32>
      %90 = vector.broadcast %89 : vector<32x1xf32> to vector<32x8xf32>
      %91 = arith.subf %87, %90 : vector<32x8xf32>
      %92 = math.exp %91 : vector<32x8xf32>
      %cst_48 = arith.constant dense<0.000000e+00> : vector<32xf32>
      %93 = vector.multi_reduction <add>, %92, %cst_48 [1] : vector<32x8xf32> to vector<32xf32>
      %94 = vector.shape_cast %93 : vector<32xf32> to vector<32x1xf32>
      %95 = vector.broadcast %94 : vector<32x1xf32> to vector<32x8xf32>
      %96 = arith.divf %92, %95 : vector<32x8xf32>
      %cst_49 = arith.constant dense<0.000000e+00> : vector<32x128xf32>
      %97 = tpu.matmul %96, %40, %cst_49 {dimension_numbers = #tpu.dot_dimension_numbers<[1], [0], [0], [1], [0, 0, 1, 1], [], []>} : vector<32x8xf32>, vector<8x128xf32>, vector<32x128xf32> -> vector<32x128xf32>
      %98 = arith.mulf %97, %39 : vector<32x128xf32>
      %cst_50 = arith.constant dense<0.000000e+00> : vector<2x128xf32>
      %99 = tpu.matmul %42, %98, %cst_50 {dimension_numbers = #tpu.dot_dimension_numbers<[1], [0], [0], [1], [0, 0, 1, 1], [], []>} : vector<2x32xf32>, vector<32x128xf32>, vector<2x128xf32> -> vector<2x128xf32>
      %100 = arith.mulf %99, %99 : vector<2x128xf32>
      %cst_51 = arith.constant dense<0.000000e+00> : vector<2x8xf32>
      %101 = tpu.matmul %100, %41, %cst_51 {dimension_numbers = #tpu.dot_dimension_numbers<[1], [0], [0], [1], [0, 0, 1, 1], [], []>} : vector<2x128xf32>, vector<128x8xf32>, vector<2x8xf32> -> vector<2x8xf32>
      %cst_52 = arith.constant dense<0.000000e+00> : vector<2x128xf32>
      %102 = tpu.matmul %101, %40, %cst_52 {dimension_numbers = #tpu.dot_dimension_numbers<[1], [0], [0], [1], [0, 0, 1, 1], [], []>} : vector<2x8xf32>, vector<8x128xf32>, vector<2x128xf32> -> vector<2x128xf32>
      %cst_53 = arith.constant 1.000000e+00 : f32
      %103 = vector.broadcast %cst_53 : f32 to vector<2x128xf32>
      %104 = arith.addf %103, %102 : vector<2x128xf32>
      %105 = arith.divf %102, %104 : vector<2x128xf32>
      %106 = arith.mulf %99, %105 : vector<2x128xf32>
      %107 = math.sqrt %102 : vector<2x128xf32>
      %cst_54 = arith.constant 9.99999993E-9 : f32
      %108 = vector.broadcast %cst_54 : f32 to vector<2x128xf32>
      %109 = arith.addf %107, %108 : vector<2x128xf32>
      %110 = arith.divf %106, %109 : vector<2x128xf32>
      %111 = arith.mulf %110, %110 : vector<2x128xf32>
      %cst_55 = arith.constant dense<0.000000e+00> : vector<2x8xf32>
      %112 = tpu.matmul %111, %41, %cst_55 {dimension_numbers = #tpu.dot_dimension_numbers<[1], [0], [0], [1], [0, 0, 1, 1], [], []>} : vector<2x128xf32>, vector<128x8xf32>, vector<2x8xf32> -> vector<2x8xf32>
      %113 = math.sqrt %112 : vector<2x8xf32>
      %c0_56 = arith.constant 0 : index
      %c0_57 = arith.constant 0 : index
      %114 = vector.load %arg8[%c0_56, %c0_57] : memref<2x8xf32, #tpu.memory_space<vmem>>, vector<2x8xf32>
      tpu.vector_store %arg8[%c0_56, %c0_57], %113 {strides = array<i32>} : memref<2x8xf32, #tpu.memory_space<vmem>>, vector<2x8xf32>,
    } else {
    }
    return
  }
  func.func @transform_0(%arg0: i32) -> (i32, i32, i32) {
    %c0_i32 = arith.constant 0 : i32
    %c0_i32_0 = arith.constant 0 : i32
    %c0_i32_1 = arith.constant 0 : i32
    return %arg0, %c0_i32, %c0_i32_0 : i32, i32, i32
  }
  func.func @transform_1(%arg0: i32) -> (i32, i32, i32) {
    %c0_i32 = arith.constant 0 : i32
    %c0_i32_0 = arith.constant 0 : i32
    %c0_i32_1 = arith.constant 0 : i32
    return %arg0, %c0_i32, %c0_i32_0 : i32, i32, i32
  }
  func.func @transform_2(%arg0: i32) -> (i32, i32) {
    %c0_i32 = arith.constant 0 : i32
    %c0_i32_0 = arith.constant 0 : i32
    return %arg0, %c0_i32 : i32, i32
  }
  func.func @transform_3(%arg0: i32) -> (i32, i32) {
    %c0_i32 = arith.constant 0 : i32
    %c0_i32_0 = arith.constant 0 : i32
    %c0_i32_1 = arith.constant 0 : i32
    return %c0_i32, %c0_i32_0 : i32, i32
  }
  func.func @transform_4(%arg0: i32) -> (i32, i32) {
    %c0_i32 = arith.constant 0 : i32
    %c0_i32_0 = arith.constant 0 : i32
    %c0_i32_1 = arith.constant 0 : i32
    return %c0_i32, %c0_i32_0 : i32, i32
  }
  func.func @transform_5(%arg0: i32) -> (i32, i32) {
    %c0_i32 = arith.constant 0 : i32
    %c0_i32_0 = arith.constant 0 : i32
    %c0_i32_1 = arith.constant 0 : i32
    return %c0_i32, %c0_i32_0 : i32, i32
  }
  func.func @transform_6(%arg0: i32) -> (i32, i32) {
    %c0_i32 = arith.constant 0 : i32
    %c0_i32_0 = arith.constant 0 : i32
    %c0_i32_1 = arith.constant 0 : i32
    return %c0_i32, %c0_i32_0 : i32, i32
  }
  func.func @transform_7(%arg0: i32) -> (i32, i32) {
    %c0_i32 = arith.constant 0 : i32
    %c0_i32_0 = arith.constant 0 : i32
    %c0_i32_1 = arith.constant 0 : i32
    return %c0_i32, %c0_i32_0 : i32, i32
  }
}

</mosaic_0001>

<llo_original>
// kernel: tpu_custom_call.1
$region0: #{tpu_custom_call.1}
  #allocation0 [shape = 'u32[]', space=smem, size = 0x4, offset = 0x4, fixed_abs, tag = 'smem constant byte address 0x4 - core index']
  #allocation1 [shape = 'u32[144,128]{1,0:T(1,128)}', space=vmem, size = 0x12000, scoped, tag = 'internal scratch']
  #allocation2 [shape = 'f32[32,128]{1,0:T(8,128)}', space=vmem, size = 0x4000, scoped, tag = 'scratch operand']
  #allocation3 [shape = 'f32[2,128]{1,0:T(2,128)}', space=vmem, size = 0x400, scoped, tag = 'scratch operand']
  %s0 = inlined_call_operand.vmem [shape: bf16[16,2,32], index: 0, kind: input, shape index: {}]
  %s1 = inlined_call_operand.vmem [shape: s8[16,128,32], index: 1, kind: input, shape index: {}]
  %s2 = inlined_call_operand.vmem [shape: f32[16,128], index: 2, kind: input, shape index: {}]
  %s3 = inlined_call_operand.vmem [shape: f32[8,128], index: 3, kind: input, shape index: {}]
  %s4 = inlined_call_operand.vmem [shape: f32[128,8], index: 4, kind: input, shape index: {}]
  %s5 = inlined_call_operand.vmem [shape: f32[2,32], index: 5, kind: input, shape index: {}]
  %s6 = inlined_call_operand.vmem [shape: f32[32,2], index: 6, kind: input, shape index: {}]
  %s7 = inlined_call_operand.hbm [shape: f32[2,8], index: 7, kind: output, shape index: {}]
  %s8 = sld [smem:[#allocation0]]
  $region69: #{tpu_custom_call.1} parent=0
    _
  %s10 = ssub.s32 1, %s8
  %s11 = scalar_select 0, %s10, %s8
  $region1: #{tpu_custom_call.1} parent=0
    #allocation4 [shape = 'u8[1024]{0}', space=vmem, size = 0x400, scoped, tag = 'output window, operand 0, single buffered']
    #allocation5 [shape = 's32[2]{0}', space=sflag, size = 0x8, scoped, tag = 'scoped memory for tpu_custom_call.1']
    %12 = vsyncpa [#allocation5], 0
    loop: start=0, step=1, limit=4
    $region2: #{tpu_custom_call.1} parent=1 // loop_pre_header
      _
    $region3: #{tpu_custom_call.1} parent=1 // loop_header
      %s14 = sphi 0, %s18
      %p15 = scmp.ge.s32.totalorder %s14, 4
      %s24 = sphi 0, %s26
      %s27 = sphi 0, %s24
      %s28 = sphi 0, %s27
      %s44 = sphi 0, %s28
      %s50 = sphi 0, %s52
      %s53 = sphi 0, %s50
      %s54 = sphi 0, %s53
      %s70 = sphi 0, %s54
      %s76 = sphi 0, %s78
      %s79 = sphi 0, %s76
      %s80 = sphi 0, %s79
      %s96 = sphi 0, %s80
      %s100 = sphi 0, %s100
      %s102 = sphi 0, %s100
      %s103 = sphi 0, %s102
      %s117 = sphi 0, %s103
      %s121 = sphi 0, %s121
      %s123 = sphi 0, %s121
      %s124 = sphi 0, %s123
      %s138 = sphi 0, %s124
      %s142 = sphi 0, %s142
      %s144 = sphi 0, %s142
      %s145 = sphi 0, %s144
      %s159 = sphi 0, %s145
      %s163 = sphi 0, %s163
      %s165 = sphi 0, %s163
      %s166 = sphi 0, %s165
      %s180 = sphi 0, %s166
      %s184 = sphi 0, %s184
      %s186 = sphi 0, %s184
      %s187 = sphi 0, %s186
      %s201 = sphi 0, %s187
    $region4: #{tpu_custom_call.1} parent=1 // loop_header_branch
      %17 = sbr.rel (%p15) target = $region8
    $region5: #{tpu_custom_call.1} parent=1 // loop_body
      %s19 = ssub.s32 %s14, 1
      %s20 = ssub.s32 %s14, 2
      %s21 = sadd.s32 %s14, 1
      %s22 = ssub.s32 %s14, %s21
      %p23 = scmp.eq.s32.totalorder %s22, 0
      %s25 = sadd.s32 %s24, 1
      %s26 = scalar_select %p23, %s24, %s25
      %p29 = pneg %p23
      %p30 = scmp.eq.s32.totalorder %s14, 1
      %p31 = por %p29, %p30
      %p32 = scmp.ne.s32.totalorder %s24, %s27
      %p33 = scmp.eq.s32.totalorder %s14, 0
      %p34 = por %p32, %p33
      %p35 = scmp.ne.s32.totalorder %s24, %s27
      %p36 = scmp.eq.s32.totalorder %s19, 1
      %p37 = por %p35, %p36
      %p38 = scmp.ne.s32.totalorder %s27, %s28
      %p39 = scmp.eq.s32.totalorder %s19, 0
      %p40 = por %p38, %p39
      %p41 = scmp.ne.s32.totalorder %s27, %s28
      %p42 = scmp.eq.s32.totalorder %s20, 1
      %p43 = por %p41, %p42
      %p45 = scmp.ne.s32.totalorder %s28, %s44
      %p46 = scmp.eq.s32.totalorder %s20, 0
      %p47 = por %p45, %p46
      %s48 = ssub.s32 %s14, %s21
      %p49 = scmp.eq.s32.totalorder %s48, 0
      %s51 = sadd.s32 %s50, 1
      %s52 = scalar_select %p49, %s50, %s51
      %p55 = pneg %p49
      %p56 = scmp.eq.s32.totalorder %s14, 1
      %p57 = por %p55, %p56
      %p58 = scmp.ne.s32.totalorder %s50, %s53
      %p59 = scmp.eq.s32.totalorder %s14, 0
      %p60 = por %p58, %p59
      %p61 = scmp.ne.s32.totalorder %s50, %s53
      %p62 = scmp.eq.s32.totalorder %s19, 1
      %p63 = por %p61, %p62
      %p64 = scmp.ne.s32.totalorder %s53, %s54
      %p65 = scmp.eq.s32.totalorder %s19, 0
      %p66 = por %p64, %p65
      %p67 = scmp.ne.s32.totalorder %s53, %s54
      %p68 = scmp.eq.s32.totalorder %s20, 1
      %p69 = por %p67, %p68
      %p71 = scmp.ne.s32.totalorder %s54, %s70
      %p72 = scmp.eq.s32.totalorder %s20, 0
      %p73 = por %p71, %p72
      %s74 = ssub.s32 %s14, %s21
      %p75 = scmp.eq.s32.totalorder %s74, 0
      %s77 = sadd.s32 %s76, 1
      %s78 = scalar_select %p75, %s76, %s77
      %p81 = pneg %p75
      %p82 = scmp.eq.s32.totalorder %s14, 1
      %p83 = por %p81, %p82
      %p84 = scmp.ne.s32.totalorder %s76, %s79
      %p85 = scmp.eq.s32.totalorder %s14, 0
      %p86 = por %p84, %p85
      %p87 = scmp.ne.s32.totalorder %s76, %s79
      %p88 = scmp.eq.s32.totalorder %s19, 1
      %p89 = por %p87, %p88
      %p90 = scmp.ne.s32.totalorder %s79, %s80
      %p91 = scmp.eq.s32.totalorder %s19, 0
      %p92 = por %p90, %p91
      %p93 = scmp.ne.s32.totalorder %s79, %s80
      %p94 = scmp.eq.s32.totalorder %s20, 1
      %p95 = por %p93, %p94
      %p97 = scmp.ne.s32.totalorder %s80, %s96
      %p98 = scmp.eq.s32.totalorder %s20, 0
      %p99 = por %p97, %p98
      %s101 = sadd.s32 %s100, 1
      %p104 = scmp.eq.s32.totalorder %s14, 1
      %p105 = scmp.ne.s32.totalorder %s100, %s102
      %p106 = scmp.eq.s32.totalorder %s14, 0
      %p107 = por %p105, %p106
      %p108 = scmp.ne.s32.totalorder %s100, %s102
      %p109 = scmp.eq.s32.totalorder %s19, 1
      %p110 = por %p108, %p109
      %p111 = scmp.ne.s32.totalorder %s102, %s103
      %p112 = scmp.eq.s32.totalorder %s19, 0
      %p113 = por %p111, %p112
      %p114 = scmp.ne.s32.totalorder %s102, %s103
      %p115 = scmp.eq.s32.totalorder %s20, 1
      %p116 = por %p114, %p115
      %p118 = scmp.ne.s32.totalorder %s103, %s117
      %p119 = scmp.eq.s32.totalorder %s20, 0
      %p120 = por %p118, %p119
      %s122 = sadd.s32 %s121, 1
      %p125 = scmp.eq.s32.totalorder %s14, 1
      %p126 = scmp.ne.s32.totalorder %s121, %s123
      %p127 = scmp.eq.s32.totalorder %s14, 0
      %p128 = por %p126, %p127
      %p129 = scmp.ne.s32.totalorder %s121, %s123
      %p130 = scmp.eq.s32.totalorder %s19, 1
      %p131 = por %p129, %p130
      %p132 = scmp.ne.s32.totalorder %s123, %s124
      %p133 = scmp.eq.s32.totalorder %s19, 0
      %p134 = por %p132, %p133
      %p135 = scmp.ne.s32.totalorder %s123, %s124
      %p136 = scmp.eq.s32.totalorder %s20, 1
      %p137 = por %p135, %p136
      %p139 = scmp.ne.s32.totalorder %s124, %s138
      %p140 = scmp.eq.s32.totalorder %s20, 0
      %p141 = por %p139, %p140
      %s143 = sadd.s32 %s142, 1
      %p146 = scmp.eq.s32.totalorder %s14, 1
      %p147 = scmp.ne.s32.totalorder %s142, %s144
      %p148 = scmp.eq.s32.totalorder %s14, 0
      %p149 = por %p147, %p148
      %p150 = scmp.ne.s32.totalorder %s142, %s144
      %p151 = scmp.eq.s32.totalorder %s19, 1
      %p152 = por %p150, %p151
      %p153 = scmp.ne.s32.totalorder %s144, %s145
      %p154 = scmp.eq.s32.totalorder %s19, 0
      %p155 = por %p153, %p154
      %p156 = scmp.ne.s32.totalorder %s144, %s145
      %p157 = scmp.eq.s32.totalorder %s20, 1
      %p158 = por %p156, %p157
      %p160 = scmp.ne.s32.totalorder %s145, %s159
      %p161 = scmp.eq.s32.totalorder %s20, 0
      %p162 = por %p160, %p161
      %s164 = sadd.s32 %s163, 1
      %p167 = scmp.eq.s32.totalorder %s14, 1
      %p168 = scmp.ne.s32.totalorder %s163, %s165
      %p169 = scmp.eq.s32.totalorder %s14, 0
      %p170 = por %p168, %p169
      %p171 = scmp.ne.s32.totalorder %s163, %s165
      %p172 = scmp.eq.s32.totalorder %s19, 1
      %p173 = por %p171, %p172
      %p174 = scmp.ne.s32.totalorder %s165, %s166
      %p175 = scmp.eq.s32.totalorder %s19, 0
      %p176 = por %p174, %p175
      %p177 = scmp.ne.s32.totalorder %s165, %s166
      %p178 = scmp.eq.s32.totalorder %s20, 1
      %p179 = por %p177, %p178
      %p181 = scmp.ne.s32.totalorder %s166, %s180
      %p182 = scmp.eq.s32.totalorder %s20, 0
      %p183 = por %p181, %p182
      %s185 = sadd.s32 %s184, 1
      %p188 = scmp.eq.s32.totalorder %s14, 1
      %p189 = scmp.ne.s32.totalorder %s184, %s186
      %p190 = scmp.eq.s32.totalorder %s14, 0
      %p191 = por %p189, %p190
      %p192 = scmp.ne.s32.totalorder %s184, %s186
      %p193 = scmp.eq.s32.totalorder %s19, 1
      %p194 = por %p192, %p193
      %p195 = scmp.ne.s32.totalorder %s186, %s187
      %p196 = scmp.eq.s32.totalorder %s19, 0
      %p197 = por %p195, %p196
      %p198 = scmp.ne.s32.totalorder %s186, %s187
      %p199 = scmp.eq.s32.totalorder %s20, 1
      %p200 = por %p198, %p199
      %p202 = scmp.ne.s32.totalorder %s187, %s201
      %p203 = scmp.eq.s32.totalorder %s20, 0
      %p204 = por %p202, %p203
      %p205 = scmp.le.s32.totalorder 1, %s14
      %p206 = scmp.lt.s32.totalorder %s14, 3
      %p207 = pnand %p205, %p206
      %p208 = pneg %p207
      // Predicated region
      $region9: #{tpu_custom_call.1} parent=5 // pred_check
        _
      $region10: #{tpu_custom_call.1} parent=5 // pred_check_branch
        %210 = sbr.rel (%p207) target = $region12
      $region11: #{tpu_custom_call.1} parent=5 // pred_region
        %s211 = ssub.s32 %s14, 1
        // Predicated region
        $region13: #{tpu_custom_call.1} parent=11 // pred_check
          %p212 = pneg %p113
        $region14: #{tpu_custom_call.1} parent=11 // pred_check_branch
          %214 = sbr.rel (%p212) target = $region16
        $region15: #{tpu_custom_call.1} parent=11 // pred_region
          _
        $region16: #{tpu_custom_call.1} parent=11 // pred_fallthru
          _
        // Predicated region
        $region17: #{tpu_custom_call.1} parent=11 // pred_check
          %p215 = pneg %p134
        $region18: #{tpu_custom_call.1} parent=11 // pred_check_branch
          %217 = sbr.rel (%p215) target = $region20
        $region19: #{tpu_custom_call.1} parent=11 // pred_region
          _
        $region20: #{tpu_custom_call.1} parent=11 // pred_fallthru
          _
        // Predicated region
        $region21: #{tpu_custom_call.1} parent=11 // pred_check
          %p218 = pneg %p155
        $region22: #{tpu_custom_call.1} parent=11 // pred_check_branch
          %220 = sbr.rel (%p218) target = $region24
        $region23: #{tpu_custom_call.1} parent=11 // pred_region
          _
        $region24: #{tpu_custom_call.1} parent=11 // pred_fallthru
          _
        // Predicated region
        $region25: #{tpu_custom_call.1} parent=11 // pred_check
          %p221 = pneg %p176
        $region26: #{tpu_custom_call.1} parent=11 // pred_check_branch
          %223 = sbr.rel (%p221) target = $region28
        $region27: #{tpu_custom_call.1} parent=11 // pred_region
          _
        $region28: #{tpu_custom_call.1} parent=11 // pred_fallthru
          _
      $region12: #{tpu_custom_call.1} parent=5 // pred_fallthru
        _
      %p224 = scmp.lt.s32.totalorder %s14, 2
      // Predicated region
      $region29: #{tpu_custom_call.1} parent=5 // pred_check
        %p225 = pneg %p224
      $region30: #{tpu_custom_call.1} parent=5 // pred_check_branch
        %227 = sbr.rel (%p225) target = $region32
      $region31: #{tpu_custom_call.1} parent=5 // pred_region
        // Predicated region
        $region33: #{tpu_custom_call.1} parent=31 // pred_check
          %p228 = pneg %p34
        $region34: #{tpu_custom_call.1} parent=31 // pred_check_branch
          %230 = sbr.rel (%p228) target = $region36
        $region35: #{tpu_custom_call.1} parent=31 // pred_region
          %s231 = smul.u32 8, %s14
          %p232 = scmp.lt.s32.totalorder %s231, 15
          %s233 = scalar_select %p232, %s231, 15
          %s234 = scalar_lea.vmem %s0, %s233
          %s235 = smul.u32 8, %s14
        $region36: #{tpu_custom_call.1} parent=31 // pred_fallthru
          _
        // Predicated region
        $region37: #{tpu_custom_call.1} parent=31 // pred_check
          %p236 = pneg %p60
        $region38: #{tpu_custom_call.1} parent=31 // pred_check_branch
          %238 = sbr.rel (%p236) target = $region40
        $region39: #{tpu_custom_call.1} parent=31 // pred_region
          %s239 = smul.u32 8, %s14
          %p240 = scmp.lt.s32.totalorder %s239, 15
          %s241 = scalar_select %p240, %s239, 15
          %s242 = smul.addr %s241, 4
          %s243 = smul.addr %s242, 8
          %s244 = scalar_lea.vmem %s1, %s243
          %s245 = smul.u32 8, %s14
        $region40: #{tpu_custom_call.1} parent=31 // pred_fallthru
          _
        // Predicated region
        $region41: #{tpu_custom_call.1} parent=31 // pred_check
          %p246 = pneg %p86
        $region42: #{tpu_custom_call.1} parent=31 // pred_check_branch
          %248 = sbr.rel (%p246) target = $region44
        $region43: #{tpu_custom_call.1} parent=31 // pred_region
          %p249 = scmp.lt.s32.totalorder %s14, 1
          %s250 = scalar_select %p249, %s14, 1
          %s251 = smul.addr %s250, 8
          %s252 = scalar_lea.vmem %s2, %s251
        $region44: #{tpu_custom_call.1} parent=31 // pred_fallthru
          _
      $region32: #{tpu_custom_call.1} parent=5 // pred_fallthru
        _
      %p253 = scmp.le.s32.totalorder 1, %s14
      %p254 = scmp.lt.s32.totalorder %s14, 3
      %p255 = pnand %p253, %p254
      %p256 = pneg %p255
      // Predicated region
      $region45: #{tpu_custom_call.1} parent=5 // pred_check
        _
      $region46: #{tpu_custom_call.1} parent=5 // pred_check_branch
        %258 = sbr.rel (%p255) target = $region48
      $region47: #{tpu_custom_call.1} parent=5 // pred_region
        %s259 = ssub.s32 %s14, 1
        %s260 = smul.u32 8, %s19
        %p261 = scmp.lt.s32.totalorder %s260, 15
        %s262 = scalar_select %p261, %s260, 15
        %s263 = scalar_lea.vmem %s0, %s262
        %p264 = pneg %p40
        %p265 = pneg %p37
        %s266 = smul.u32 8, %s19
        %p267 = scmp.lt.s32.totalorder %s266, 15
        %s268 = scalar_select %p267, %s266, 15
        %s269 = smul.addr %s268, 4
        %s270 = smul.addr %s269, 8
        %s271 = scalar_lea.vmem %s1, %s270
        %p272 = pneg %p66
        %p273 = pneg %p63
        %p274 = scmp.lt.s32.totalorder %s19, 1
        %s275 = scalar_select %p274, %s19, 1
        %s276 = smul.addr %s275, 8
        %s277 = scalar_lea.vmem %s2, %s276
        %p278 = pneg %p92
        %p279 = pneg %p89
        %p280 = pneg %p113
        %p281 = pneg %p110
        %p282 = pneg %p134
        %p283 = pneg %p131
        %p284 = pneg %p155
        %p285 = pneg %p152
        %p286 = pneg %p176
        %p287 = pneg %p173
        %p288 = pneg %p197
        %p289 = pneg %p194
        %s290 = smul.u32 8, %s19
        %p291 = scmp.lt.s32.totalorder %s290, 15
        %s292 = scalar_select %p291, %s290, 15
        %s293 = scalar_lea.vmem %s0, %s292
        %s294 = smul.u32 8, %s19
        %s295 = smul.u32 8, %s19
        %p296 = scmp.lt.s32.totalorder %s295, 15
        %s297 = scalar_select %p296, %s295, 15
        %s298 = smul.addr %s297, 4
        %s299 = smul.addr %s298, 8
        %s300 = scalar_lea.vmem %s1, %s299
        %s301 = smul.u32 8, %s19
        %p302 = scmp.lt.s32.totalorder %s19, 1
        %s303 = scalar_select %p302, %s19, 1
        %s304 = smul.addr %s303, 8
        %s305 = scalar_lea.vmem %s2, %s304
        %s307 = smul.u32 %s19, 16
        %v308 = vld [vmem:[%s293] sm:$0x1]
        %v309 = vld [vmem:[%s293 + $0x1] sm:$0x1]
        %v310 = vld [vmem:[%s293 + $0x2] sm:$0x1]
        %v311 = vld [vmem:[%s293 + $0x3] sm:$0x1]
        %v312 = vld [vmem:[%s293 + $0x4] sm:$0x1]
        %v313 = vld [vmem:[%s293 + $0x5] sm:$0x1]
        %v314 = vld [vmem:[%s293 + $0x6] sm:$0x1]
        %v315 = vld [vmem:[%s293 + $0x7] sm:$0x1]
        %v316 = vunpack.c.l.bf16 %v308
        %v317 = vunpack.c.l.bf16 %v309
        %v318 = vunpack.c.l.bf16 %v310
        %v319 = vunpack.c.l.bf16 %v311
        %v320 = vunpack.c.l.bf16 %v312
        %v321 = vunpack.c.l.bf16 %v313
        %v322 = vunpack.c.l.bf16 %v314
        %v323 = vunpack.c.l.bf16 %v315
        %v324 = vmul.f32 %v316, %v316
        %v325 = vmul.f32 %v317, %v317
        %v326 = vmul.f32 %v318, %v318
        %v327 = vmul.f32 %v319, %v319
        %v328 = vmul.f32 %v320, %v320
        %v329 = vmul.f32 %v321, %v321
        %v330 = vmul.f32 %v322, %v322
        %v331 = vmul.f32 %v323, %v323
        %vm332 = vcmask 254976
        %v333 = vsel %vm332, %v324, 0.0
        %334 = vadd.xlane.f32.xlu0 %v333
        %v335 = vpop.xlane.xlu0 %334
        %v336 = vsel %vm332, %v325, 0.0
        %337 = vadd.xlane.f32.xlu0 %v336
        %v338 = vpop.xlane.xlu0 %337
        %v339 = vsel %vm332, %v326, 0.0
        %340 = vadd.xlane.f32.xlu0 %v339
        %v341 = vpop.xlane.xlu0 %340
        %v342 = vsel %vm332, %v327, 0.0
        %343 = vadd.xlane.f32.xlu0 %v342
        %v344 = vpop.xlane.xlu0 %343
        %v345 = vsel %vm332, %v328, 0.0
        %346 = vadd.xlane.f32.xlu0 %v345
        %v347 = vpop.xlane.xlu0 %346
        %v348 = vsel %vm332, %v329, 0.0
        %349 = vadd.xlane.f32.xlu0 %v348
        %v350 = vpop.xlane.xlu0 %349
        %v351 = vsel %vm332, %v330, 0.0
        %352 = vadd.xlane.f32.xlu0 %v351
        %v353 = vpop.xlane.xlu0 %352
        %v354 = vsel %vm332, %v331, 0.0
        %355 = vadd.xlane.f32.xlu0 %v354
        %v356 = vpop.xlane.xlu0 %355
        %v357 = vadd.f32 %v335, 1.0
        %v358 = vadd.f32 %v338, 1.0
        %v359 = vadd.f32 %v341, 1.0
        %v360 = vadd.f32 %v344, 1.0
        %v361 = vadd.f32 %v347, 1.0
        %v362 = vadd.f32 %v350, 1.0
        %v363 = vadd.f32 %v353, 1.0
        %v364 = vadd.f32 %v356, 1.0
        %v365 = vrcp.pop %v357
        %v366 = vmul.f32 %v335, %v365
        %v367 = vrcp.pop %v358
        %v368 = vmul.f32 %v338, %v367
        %v369 = vrcp.pop %v359
        %v370 = vmul.f32 %v341, %v369
        %v371 = vrcp.pop %v360
        %v372 = vmul.f32 %v344, %v371
        %v373 = vrcp.pop %v361
        %v374 = vmul.f32 %v347, %v373
        %v375 = vrcp.pop %v362
        %v376 = vmul.f32 %v350, %v375
        %v377 = vrcp.pop %v363
        %v378 = vmul.f32 %v353, %v377
        %v379 = vrcp.pop %v364
        %v380 = vmul.f32 %v356, %v379
        %v381 = vmul.f32 %v366, %v316
        %v382 = vmul.f32 %v368, %v317
        %v383 = vmul.f32 %v370, %v318
        %v384 = vmul.f32 %v372, %v319
        %v385 = vmul.f32 %v374, %v320
        %v386 = vmul.f32 %v376, %v321
        %v387 = vmul.f32 %v378, %v322
        %v388 = vmul.f32 %v380, %v323
        %v389 = vrsqrt.pop %v335
        %v390 = vmul.f32 %v335, %v389
        %vm391 = vcmp.eq.f32.partialorder %v335, inf
        %v392 = vsel %vm391, %v335, %v390
        %vm393 = vcmp.eq.f32.partialorder %v335, 0.0
        %v394 = vand.u32 %v335, 2147483648
        %v395 = vsel %vm393, %v394, %v392
        %v396 = vrsqrt.pop %v338
        %v397 = vmul.f32 %v338, %v396
        %vm398 = vcmp.eq.f32.partialorder %v338, inf
        %v399 = vsel %vm398, %v338, %v397
        %vm400 = vcmp.eq.f32.partialorder %v338, 0.0
        %v401 = vand.u32 %v338, 2147483648
        %v402 = vsel %vm400, %v401, %v399
        %v403 = vrsqrt.pop %v341
        %v404 = vmul.f32 %v341, %v403
        %vm405 = vcmp.eq.f32.partialorder %v341, inf
        %v406 = vsel %vm405, %v341, %v404
        %vm407 = vcmp.eq.f32.partialorder %v341, 0.0
        %v408 = vand.u32 %v341, 2147483648
        %v409 = vsel %vm407, %v408, %v406
        %v410 = vrsqrt.pop %v344
        %v411 = vmul.f32 %v344, %v410
        %vm412 = vcmp.eq.f32.partialorder %v344, inf
        %v413 = vsel %vm412, %v344, %v411
        %vm414 = vcmp.eq.f32.partialorder %v344, 0.0
        %v415 = vand.u32 %v344, 2147483648
        %v416 = vsel %vm414, %v415, %v413
        %v417 = vrsqrt.pop %v347
        %v418 = vmul.f32 %v347, %v417
        %vm419 = vcmp.eq.f32.partialorder %v347, inf
        %v420 = vsel %vm419, %v347, %v418
        %vm421 = vcmp.eq.f32.partialorder %v347, 0.0
        %v422 = vand.u32 %v347, 2147483648
        %v423 = vsel %vm421, %v422, %v420
        %v424 = vrsqrt.pop %v350
        %v425 = vmul.f32 %v350, %v424
        %vm426 = vcmp.eq.f32.partialorder %v350, inf
        %v427 = vsel %vm426, %v350, %v425
        %vm428 = vcmp.eq.f32.partialorder %v350, 0.0
        %v429 = vand.u32 %v350, 2147483648
        %v430 = vsel %vm428, %v429, %v427
        %v431 = vrsqrt.pop %v353
        %v432 = vmul.f32 %v353, %v431
        %vm433 = vcmp.eq.f32.partialorder %v353, inf
        %v434 = vsel %vm433, %v353, %v432
        %vm435 = vcmp.eq.f32.partialorder %v353, 0.0
        %v436 = vand.u32 %v353, 2147483648
        %v437 = vsel %vm435, %v436, %v434
        %v438 = vrsqrt.pop %v356
        %v439 = vmul.f32 %v356, %v438
        %vm440 = vcmp.eq.f32.partialorder %v356, inf
        %v441 = vsel %vm440, %v356, %v439
        %vm442 = vcmp.eq.f32.partialorder %v356, 0.0
        %v443 = vand.u32 %v356, 2147483648
        %v444 = vsel %vm442, %v443, %v441
        %v445 = vadd.f32 %v395, 1e-08
        %v446 = vadd.f32 %v402, 1e-08
        %v447 = vadd.f32 %v409, 1e-08
        %v448 = vadd.f32 %v416, 1e-08
        %v449 = vadd.f32 %v423, 1e-08
        %v450 = vadd.f32 %v430, 1e-08
        %v451 = vadd.f32 %v437, 1e-08
        %v452 = vadd.f32 %v444, 1e-08
        %v453 = vrcp.pop %v445
        %v454 = vmul.f32 %v381, %v453
        %v455 = vrcp.pop %v446
        %v456 = vmul.f32 %v382, %v455
        %v457 = vrcp.pop %v447
        %v458 = vmul.f32 %v383, %v457
        %v459 = vrcp.pop %v448
        %v460 = vmul.f32 %v384, %v459
        %v461 = vrcp.pop %v449
        %v462 = vmul.f32 %v385, %v461
        %v463 = vrcp.pop %v450
        %v464 = vmul.f32 %v386, %v463
        %v465 = vrcp.pop %v451
        %v466 = vmul.f32 %v387, %v465
        %v467 = vrcp.pop %v452
        %v468 = vmul.f32 %v388, %v467
        %v469 = vld [vmem:[%s300] sm:$0xff]
        %v470 = vld [vmem:[%s300 + $0x8] sm:$0xff]
        %v471 = vld [vmem:[%s300 + $0x10] sm:$0xff]
        %v472 = vld [vmem:[%s300 + $0x18] sm:$0xff]
        %v473 = vld [vmem:[%s300 + $0x20] sm:$0xff]
        %v474 = vld [vmem:[%s300 + $0x28] sm:$0xff]
        %v475 = vld [vmem:[%s300 + $0x30] sm:$0xff]
        %v476 = vld [vmem:[%s300 + $0x38] sm:$0xff]
        %v477 = vld [vmem:[%s300 + $0x40] sm:$0xff]
        %v478 = vld [vmem:[%s300 + $0x48] sm:$0xff]
        %v479 = vld [vmem:[%s300 + $0x50] sm:$0xff]
        %v480 = vld [vmem:[%s300 + $0x58] sm:$0xff]
        %v481 = vld [vmem:[%s300 + $0x60] sm:$0xff]
        %v482 = vld [vmem:[%s300 + $0x68] sm:$0xff]
        %v483 = vld [vmem:[%s300 + $0x70] sm:$0xff]
        %v484 = vld [vmem:[%s300 + $0x78] sm:$0xff]
        %v485 = vld [vmem:[%s300 + $0x80] sm:$0xff]
        %v486 = vld [vmem:[%s300 + $0x88] sm:$0xff]
        %v487 = vld [vmem:[%s300 + $0x90] sm:$0xff]
        %v488 = vld [vmem:[%s300 + $0x98] sm:$0xff]
        %v489 = vld [vmem:[%s300 + $0xa0] sm:$0xff]
        %v490 = vld [vmem:[%s300 + $0xa8] sm:$0xff]
        %v491 = vld [vmem:[%s300 + $0xb0] sm:$0xff]
        %v492 = vld [vmem:[%s300 + $0xb8] sm:$0xff]
        %v493 = vld [vmem:[%s300 + $0xc0] sm:$0xff]
        %v494 = vld [vmem:[%s300 + $0xc8] sm:$0xff]
        %v495 = vld [vmem:[%s300 + $0xd0] sm:$0xff]
        %v496 = vld [vmem:[%s300 + $0xd8] sm:$0xff]
        %v497 = vld [vmem:[%s300 + $0xe0] sm:$0xff]
        %v498 = vld [vmem:[%s300 + $0xe8] sm:$0xff]
        %v499 = vld [vmem:[%s300 + $0xf0] sm:$0xff]
        %v500 = vld [vmem:[%s300 + $0xf8] sm:$0xff]
        %v501 = vunpack.c.l.s8.bf16 %v469
        %v502 = vunpack.c.h.s8.bf16 %v469
        %v503 = vunpack.c.l.s8.bf16 %v470
        %v504 = vunpack.c.h.s8.bf16 %v470
        %v505 = vunpack.c.l.s8.bf16 %v471
        %v506 = vunpack.c.h.s8.bf16 %v471
        %v507 = vunpack.c.l.s8.bf16 %v472
        %v508 = vunpack.c.h.s8.bf16 %v472
        %v509 = vunpack.c.l.s8.bf16 %v473
        %v510 = vunpack.c.h.s8.bf16 %v473
        %v511 = vunpack.c.l.s8.bf16 %v474
        %v512 = vunpack.c.h.s8.bf16 %v474
        %v513 = vunpack.c.l.s8.bf16 %v475
        %v514 = vunpack.c.h.s8.bf16 %v475
        %v515 = vunpack.c.l.s8.bf16 %v476
        %v516 = vunpack.c.h.s8.bf16 %v476
        %v517 = vunpack.c.l.s8.bf16 %v477
        %v518 = vunpack.c.h.s8.bf16 %v477
        %v519 = vunpack.c.l.s8.bf16 %v478
        %v520 = vunpack.c.h.s8.bf16 %v478
        %v521 = vunpack.c.l.s8.bf16 %v479
        %v522 = vunpack.c.h.s8.bf16 %v479
        %v523 = vunpack.c.l.s8.bf16 %v480
        %v524 = vunpack.c.h.s8.bf16 %v480
        %v525 = vunpack.c.l.s8.bf16 %v481
        %v526 = vunpack.c.h.s8.bf16 %v481
        %v527 = vunpack.c.l.s8.bf16 %v482
        %v528 = vunpack.c.h.s8.bf16 %v482
        %v529 = vunpack.c.l.s8.bf16 %v483
        %v530 = vunpack.c.h.s8.bf16 %v483
        %v531 = vunpack.c.l.s8.bf16 %v484
        %v532 = vunpack.c.h.s8.bf16 %v484
        %v533 = vunpack.c.l.s8.bf16 %v485
        %v534 = vunpack.c.h.s8.bf16 %v485
        %v535 = vunpack.c.l.s8.bf16 %v486
        %v536 = vunpack.c.h.s8.bf16 %v486
        %v537 = vunpack.c.l.s8.bf16 %v487
        %v538 = vunpack.c.h.s8.bf16 %v487
        %v539 = vunpack.c.l.s8.bf16 %v488
        %v540 = vunpack.c.h.s8.bf16 %v488
        %v541 = vunpack.c.l.s8.bf16 %v489
        %v542 = vunpack.c.h.s8.bf16 %v489
        %v543 = vunpack.c.l.s8.bf16 %v490
        %v544 = vunpack.c.h.s8.bf16 %v490
        %v545 = vunpack.c.l.s8.bf16 %v491
        %v546 = vunpack.c.h.s8.bf16 %v491
        %v547 = vunpack.c.l.s8.bf16 %v492
        %v548 = vunpack.c.h.s8.bf16 %v492
        %v549 = vunpack.c.l.s8.bf16 %v493
        %v550 = vunpack.c.h.s8.bf16 %v493
        %v551 = vunpack.c.l.s8.bf16 %v494
        %v552 = vunpack.c.h.s8.bf16 %v494
        %v553 = vunpack.c.l.s8.bf16 %v495
        %v554 = vunpack.c.h.s8.bf16 %v495
        %v555 = vunpack.c.l.s8.bf16 %v496
        %v556 = vunpack.c.h.s8.bf16 %v496
        %v557 = vunpack.c.l.s8.bf16 %v497
        %v558 = vunpack.c.h.s8.bf16 %v497
        %v559 = vunpack.c.l.s8.bf16 %v498
        %v560 = vunpack.c.h.s8.bf16 %v498
        %v561 = vunpack.c.l.s8.bf16 %v499
        %v562 = vunpack.c.h.s8.bf16 %v499
        %v563 = vunpack.c.l.s8.bf16 %v500
        %v564 = vunpack.c.h.s8.bf16 %v500
        %v565 = vpack.c.bf16 %v454, %v454
        %v566 = vpack.c.bf16 %v456, %v456
        %v567 = vpack.c.bf16 %v458, %v458
        %v568 = vpack.c.bf16 %v460, %v460
        %v569 = vpack.c.bf16 %v462, %v462
        %v570 = vpack.c.bf16 %v464, %v464
        %v571 = vpack.c.bf16 %v466, %v466
        %v572 = vpack.c.bf16 %v468, %v468
        %vm573 = vcmask 261120
        %v575 = vsel %vm573, %v565, 0
        %v578 = vsel %vm573, %v501, 0
        %v581 = vsel %vm573, %v502, 0
        %v584 = vsel %vm573, %v503, 0
        %v587 = vsel %vm573, %v504, 0
        %v590 = vsel %vm573, %v505, 0
        %v593 = vsel %vm573, %v506, 0
        %v596 = vsel %vm573, %v507, 0
        %v599 = vsel %vm573, %v508, 0
        %601 = vmatprep.subr.bf16.mxu0 0
        %602 = vmatpush1.bf16.xpose.msra.mxu0 %v578
        %603 = vmatprep.subr.bf16.mxu0 0
        %604 = vmatpush1.bf16.xpose.msra.mxu0 %v581
        %605 = vmatprep.subr.bf16.mxu0 0
        %606 = vmatpush1.bf16.xpose.msra.mxu0 %v584
        %607 = vmatprep.subr.bf16.mxu0 0
        %608 = vmatpush1.bf16.xpose.msra.mxu0 %v587
        %609 = vmatprep.subr.bf16.mxu0 0
        %610 = vmatpush1.bf16.xpose.msra.mxu0 %v590
        %611 = vmatprep.subr.bf16.mxu0 0
        %612 = vmatpush1.bf16.xpose.msra.mxu0 %v593
        %613 = vmatprep.subr.bf16.mxu0 0
        %614 = vmatpush1.bf16.xpose.msra.mxu0 %v596
        %615 = vmatprep.subr.bf16.mxu0 0
        %616 = vmatpush1.bf16.xpose.msra.mxu0 %v599
        %617 = vmatprep.subr.bf16.mxu0 0
        %618 = vmatpush1.bf16.xpose.msra.mxu0 0
        %619 = vmatprep.subr.bf16.mxu0 0
        %620 = vmatpush1.bf16.xpose.msra.mxu0 0
        %621 = vmatprep.subr.bf16.mxu0 0
        %622 = vmatpush1.bf16.xpose.msra.mxu0 0
        %623 = vmatprep.subr.bf16.mxu0 0
        %624 = vmatpush1.bf16.xpose.msra.mxu0 0
        %625 = vmatprep.subr.bf16.mxu0 0
        %626 = vmatpush1.bf16.xpose.msra.mxu0 0
        %627 = vmatprep.subr.bf16.mxu0 0
        %628 = vmatpush1.bf16.xpose.msra.mxu0 0
        %629 = vmatprep.subr.bf16.mxu0 0
        %630 = vmatpush1.bf16.xpose.msra.mxu0 0
        %631 = vmatprep.subr.bf16.mxu0 0
        %632 = vmatpush1.bf16.xpose.msra.mxu0 0
        %633 = vmatprep.mubr.bf16.mxu0 0
        %634 = vmatmul.mubr.bf16.gmra.mrb[0].mxu0 %v575
        %v635 = vpop.f32.mrb[0].mxu0
        %v636 = vadd.f32 0.0, %v635
        %v637 = vpop.f32.mrb[0].mxu0
        %v638 = vpop.f32.mrb[0].mxu0
        %v639 = vpop.f32.mrb[0].mxu0
        %640 = vdwg.mxu0
        %v642 = vsel %vm573, %v566, 0
        %v645 = vsel %vm573, %v509, 0
        %v648 = vsel %vm573, %v510, 0
        %v651 = vsel %vm573, %v511, 0
        %v654 = vsel %vm573, %v512, 0
        %v657 = vsel %vm573, %v513, 0
        %v660 = vsel %vm573, %v514, 0
        %v663 = vsel %vm573, %v515, 0
        %v666 = vsel %vm573, %v516, 0
        %668 = vmatprep.subr.bf16.mxu0 0
        %669 = vmatpush1.bf16.xpose.msra.mxu0 %v645
        %670 = vmatprep.subr.bf16.mxu0 0
        %671 = vmatpush1.bf16.xpose.msra.mxu0 %v648
        %672 = vmatprep.subr.bf16.mxu0 0
        %673 = vmatpush1.bf16.xpose.msra.mxu0 %v651
        %674 = vmatprep.subr.bf16.mxu0 0
        %675 = vmatpush1.bf16.xpose.msra.mxu0 %v654
        %676 = vmatprep.subr.bf16.mxu0 0
        %677 = vmatpush1.bf16.xpose.msra.mxu0 %v657
        %678 = vmatprep.subr.bf16.mxu0 0
        %679 = vmatpush1.bf16.xpose.msra.mxu0 %v660
        %680 = vmatprep.subr.bf16.mxu0 0
        %681 = vmatpush1.bf16.xpose.msra.mxu0 %v663
        %682 = vmatprep.subr.bf16.mxu0 0
        %683 = vmatpush1.bf16.xpose.msra.mxu0 %v666
        %684 = vmatprep.subr.bf16.mxu0 0
        %685 = vmatpush1.bf16.xpose.msra.mxu0 0
        %686 = vmatprep.subr.bf16.mxu0 0
        %687 = vmatpush1.bf16.xpose.msra.mxu0 0
        %688 = vmatprep.subr.bf16.mxu0 0
        %689 = vmatpush1.bf16.xpose.msra.mxu0 0
        %690 = vmatprep.subr.bf16.mxu0 0
        %691 = vmatpush1.bf16.xpose.msra.mxu0 0
        %692 = vmatprep.subr.bf16.mxu0 0
        %693 = vmatpush1.bf16.xpose.msra.mxu0 0
        %694 = vmatprep.subr.bf16.mxu0 0
        %695 = vmatpush1.bf16.xpose.msra.mxu0 0
        %696 = vmatprep.subr.bf16.mxu0 0
        %697 = vmatpush1.bf16.xpose.msra.mxu0 0
        %698 = vmatprep.subr.bf16.mxu0 0
        %699 = vmatpush1.bf16.xpose.msra.mxu0 0
        %700 = vmatprep.mubr.bf16.mxu0 0
        %701 = vmatmul.mubr.bf16.gmra.mrb[0].mxu0 %v642
        %v702 = vpop.f32.mrb[0].mxu0
        %v703 = vadd.f32 0.0, %v702
        %v704 = vpop.f32.mrb[0].mxu0
        %v705 = vpop.f32.mrb[0].mxu0
        %v706 = vpop.f32.mrb[0].mxu0
        %707 = vdwg.mxu0
        %v709 = vsel %vm573, %v567, 0
        %v712 = vsel %vm573, %v517, 0
        %v715 = vsel %vm573, %v518, 0
        %v718 = vsel %vm573, %v519, 0
        %v721 = vsel %vm573, %v520, 0
        %v724 = vsel %vm573, %v521, 0
        %v727 = vsel %vm573, %v522, 0
        %v730 = vsel %vm573, %v523, 0
        %v733 = vsel %vm573, %v524, 0
        %735 = vmatprep.subr.bf16.mxu0 0
        %736 = vmatpush1.bf16.xpose.msra.mxu0 %v712
        %737 = vmatprep.subr.bf16.mxu0 0
        %738 = vmatpush1.bf16.xpose.msra.mxu0 %v715
        %739 = vmatprep.subr.bf16.mxu0 0
        %740 = vmatpush1.bf16.xpose.msra.mxu0 %v718
        %741 = vmatprep.subr.bf16.mxu0 0
        %742 = vmatpush1.bf16.xpose.msra.mxu0 %v721
        %743 = vmatprep.subr.bf16.mxu0 0
        %744 = vmatpush1.bf16.xpose.msra.mxu0 %v724
        %745 = vmatprep.subr.bf16.mxu0 0
        %746 = vmatpush1.bf16.xpose.msra.mxu0 %v727
        %747 = vmatprep.subr.bf16.mxu0 0
        %748 = vmatpush1.bf16.xpose.msra.mxu0 %v730
        %749 = vmatprep.subr.bf16.mxu0 0
        %750 = vmatpush1.bf16.xpose.msra.mxu0 %v733
        %751 = vmatprep.subr.bf16.mxu0 0
        %752 = vmatpush1.bf16.xpose.msra.mxu0 0
        %753 = vmatprep.subr.bf16.mxu0 0
        %754 = vmatpush1.bf16.xpose.msra.mxu0 0
        %755 = vmatprep.subr.bf16.mxu0 0
        %756 = vmatpush1.bf16.xpose.msra.mxu0 0
        %757 = vmatprep.subr.bf16.mxu0 0
        %758 = vmatpush1.bf16.xpose.msra.mxu0 0
        %759 = vmatprep.subr.bf16.mxu0 0
        %760 = vmatpush1.bf16.xpose.msra.mxu0 0
        %761 = vmatprep.subr.bf16.mxu0 0
        %762 = vmatpush1.bf16.xpose.msra.mxu0 0
        %763 = vmatprep.subr.bf16.mxu0 0
        %764 = vmatpush1.bf16.xpose.msra.mxu0 0
        %765 = vmatprep.subr.bf16.mxu0 0
        %766 = vmatpush1.bf16.xpose.msra.mxu0 0
        %767 = vmatprep.mubr.bf16.mxu0 0
        %768 = vmatmul.mubr.bf16.gmra.mrb[0].mxu0 %v709
        %v769 = vpop.f32.mrb[0].mxu0
        %v770 = vadd.f32 0.0, %v769
        %v771 = vpop.f32.mrb[0].mxu0
        %v772 = vpop.f32.mrb[0].mxu0
        %v773 = vpop.f32.mrb[0].mxu0
        %774 = vdwg.mxu0
        %v776 = vsel %vm573, %v568, 0
        %v779 = vsel %vm573, %v525, 0
        %v782 = vsel %vm573, %v526, 0
        %v785 = vsel %vm573, %v527, 0
        %v788 = vsel %vm573, %v528, 0
        %v791 = vsel %vm573, %v529, 0
        %v794 = vsel %vm573, %v530, 0
        %v797 = vsel %vm573, %v531, 0
        %v800 = vsel %vm573, %v532, 0
        %802 = vmatprep.subr.bf16.mxu0 0
        %803 = vmatpush1.bf16.xpose.msra.mxu0 %v779
        %804 = vmatprep.subr.bf16.mxu0 0
        %805 = vmatpush1.bf16.xpose.msra.mxu0 %v782
        %806 = vmatprep.subr.bf16.mxu0 0
        %807 = vmatpush1.bf16.xpose.msra.mxu0 %v785
        %808 = vmatprep.subr.bf16.mxu0 0
        %809 = vmatpush1.bf16.xpose.msra.mxu0 %v788
        %810 = vmatprep.subr.bf16.mxu0 0
        %811 = vmatpush1.bf16.xpose.msra.mxu0 %v791
        %812 = vmatprep.subr.bf16.mxu0 0
        %813 = vmatpush1.bf16.xpose.msra.mxu0 %v794
        %814 = vmatprep.subr.bf16.mxu0 0
        %815 = vmatpush1.bf16.xpose.msra.mxu0 %v797
        %816 = vmatprep.subr.bf16.mxu0 0
        %817 = vmatpush1.bf16.xpose.msra.mxu0 %v800
        %818 = vmatprep.subr.bf16.mxu0 0
        %819 = vmatpush1.bf16.xpose.msra.mxu0 0
        %820 = vmatprep.subr.bf16.mxu0 0
        %821 = vmatpush1.bf16.xpose.msra.mxu0 0
        %822 = vmatprep.subr.bf16.mxu0 0
        %823 = vmatpush1.bf16.xpose.msra.mxu0 0
        %824 = vmatprep.subr.bf16.mxu0 0
        %825 = vmatpush1.bf16.xpose.msra.mxu0 0
        %826 = vmatprep.subr.bf16.mxu0 0
        %827 = vmatpush1.bf16.xpose.msra.mxu0 0
        %828 = vmatprep.subr.bf16.mxu0 0
        %829 = vmatpush1.bf16.xpose.msra.mxu0 0
        %830 = vmatprep.subr.bf16.mxu0 0
        %831 = vmatpush1.bf16.xpose.msra.mxu0 0
        %832 = vmatprep.subr.bf16.mxu0 0
        %833 = vmatpush1.bf16.xpose.msra.mxu0 0
        %834 = vmatprep.mubr.bf16.mxu0 0
        %835 = vmatmul.mubr.bf16.gmra.mrb[0].mxu0 %v776
        %v836 = vpop.f32.mrb[0].mxu0
        %v837 = vadd.f32 0.0, %v836
        %v838 = vpop.f32.mrb[0].mxu0
        %v839 = vpop.f32.mrb[0].mxu0
        %v840 = vpop.f32.mrb[0].mxu0
        %841 = vdwg.mxu0
        %v843 = vsel %vm573, %v569, 0
        %v846 = vsel %vm573, %v533, 0
        %v849 = vsel %vm573, %v534, 0
        %v852 = vsel %vm573, %v535, 0
        %v855 = vsel %vm573, %v536, 0
        %v858 = vsel %vm573, %v537, 0
        %v861 = vsel %vm573, %v538, 0
        %v864 = vsel %vm573, %v539, 0
        %v867 = vsel %vm573, %v540, 0
        %869 = vmatprep.subr.bf16.mxu0 0
        %870 = vmatpush1.bf16.xpose.msra.mxu0 %v846
        %871 = vmatprep.subr.bf16.mxu0 0
        %872 = vmatpush1.bf16.xpose.msra.mxu0 %v849
        %873 = vmatprep.subr.bf16.mxu0 0
        %874 = vmatpush1.bf16.xpose.msra.mxu0 %v852
        %875 = vmatprep.subr.bf16.mxu0 0
        %876 = vmatpush1.bf16.xpose.msra.mxu0 %v855
        %877 = vmatprep.subr.bf16.mxu0 0
        %878 = vmatpush1.bf16.xpose.msra.mxu0 %v858
        %879 = vmatprep.subr.bf16.mxu0 0
        %880 = vmatpush1.bf16.xpose.msra.mxu0 %v861
        %881 = vmatprep.subr.bf16.mxu0 0
        %882 = vmatpush1.bf16.xpose.msra.mxu0 %v864
        %883 = vmatprep.subr.bf16.mxu0 0
        %884 = vmatpush1.bf16.xpose.msra.mxu0 %v867
        %885 = vmatprep.subr.bf16.mxu0 0
        %886 = vmatpush1.bf16.xpose.msra.mxu0 0
        %887 = vmatprep.subr.bf16.mxu0 0
        %888 = vmatpush1.bf16.xpose.msra.mxu0 0
        %889 = vmatprep.subr.bf16.mxu0 0
        %890 = vmatpush1.bf16.xpose.msra.mxu0 0
        %891 = vmatprep.subr.bf16.mxu0 0
        %892 = vmatpush1.bf16.xpose.msra.mxu0 0
        %893 = vmatprep.subr.bf16.mxu0 0
        %894 = vmatpush1.bf16.xpose.msra.mxu0 0
        %895 = vmatprep.subr.bf16.mxu0 0
        %896 = vmatpush1.bf16.xpose.msra.mxu0 0
        %897 = vmatprep.subr.bf16.mxu0 0
        %898 = vmatpush1.bf16.xpose.msra.mxu0 0
        %899 = vmatprep.subr.bf16.mxu0 0
        %900 = vmatpush1.bf16.xpose.msra.mxu0 0
        %901 = vmatprep.mubr.bf16.mxu0 0
        %902 = vmatmul.mubr.bf16.gmra.mrb[0].mxu0 %v843
        %v903 = vpop.f32.mrb[0].mxu0
        %v904 = vadd.f32 0.0, %v903
        %v905 = vpop.f32.mrb[0].mxu0
        %v906 = vpop.f32.mrb[0].mxu0
        %v907 = vpop.f32.mrb[0].mxu0
        %908 = vdwg.mxu0
        %v910 = vsel %vm573, %v570, 0
        %v913 = vsel %vm573, %v541, 0
        %v916 = vsel %vm573, %v542, 0
        %v919 = vsel %vm573, %v543, 0
        %v922 = vsel %vm573, %v544, 0
        %v925 = vsel %vm573, %v545, 0
        %v928 = vsel %vm573, %v546, 0
        %v931 = vsel %vm573, %v547, 0
        %v934 = vsel %vm573, %v548, 0
        %936 = vmatprep.subr.bf16.mxu0 0
        %937 = vmatpush1.bf16.xpose.msra.mxu0 %v913
        %938 = vmatprep.subr.bf16.mxu0 0
        %939 = vmatpush1.bf16.xpose.msra.mxu0 %v916
        %940 = vmatprep.subr.bf16.mxu0 0
        %941 = vmatpush1.bf16.xpose.msra.mxu0 %v919
        %942 = vmatprep.subr.bf16.mxu0 0
        %943 = vmatpush1.bf16.xpose.msra.mxu0 %v922
        %944 = vmatprep.subr.bf16.mxu0 0
        %945 = vmatpush1.bf16.xpose.msra.mxu0 %v925
        %946 = vmatprep.subr.bf16.mxu0 0
        %947 = vmatpush1.bf16.xpose.msra.mxu0 %v928
        %948 = vmatprep.subr.bf16.mxu0 0
        %949 = vmatpush1.bf16.xpose.msra.mxu0 %v931
        %950 = vmatprep.subr.bf16.mxu0 0
        %951 = vmatpush1.bf16.xpose.msra.mxu0 %v934
        %952 = vmatprep.subr.bf16.mxu0 0
        %953 = vmatpush1.bf16.xpose.msra.mxu0 0
        %954 = vmatprep.subr.bf16.mxu0 0
        %955 = vmatpush1.bf16.xpose.msra.mxu0 0
        %956 = vmatprep.subr.bf16.mxu0 0
        %957 = vmatpush1.bf16.xpose.msra.mxu0 0
        %958 = vmatprep.subr.bf16.mxu0 0
        %959 = vmatpush1.bf16.xpose.msra.mxu0 0
        %960 = vmatprep.subr.bf16.mxu0 0
        %961 = vmatpush1.bf16.xpose.msra.mxu0 0
        %962 = vmatprep.subr.bf16.mxu0 0
        %963 = vmatpush1.bf16.xpose.msra.mxu0 0
        %964 = vmatprep.subr.bf16.mxu0 0
        %965 = vmatpush1.bf16.xpose.msra.mxu0 0
        %966 = vmatprep.subr.bf16.mxu0 0
        %967 = vmatpush1.bf16.xpose.msra.mxu0 0
        %968 = vmatprep.mubr.bf16.mxu0 0
        %969 = vmatmul.mubr.bf16.gmra.mrb[0].mxu0 %v910
        %v970 = vpop.f32.mrb[0].mxu0
        %v971 = vadd.f32 0.0, %v970
        %v972 = vpop.f32.mrb[0].mxu0
        %v973 = vpop.f32.mrb[0].mxu0
        %v974 = vpop.f32.mrb[0].mxu0
        %975 = vdwg.mxu0
        %v977 = vsel %vm573, %v571, 0
        %v980 = vsel %vm573, %v549, 0
        %v983 = vsel %vm573, %v550, 0
        %v986 = vsel %vm573, %v551, 0
        %v989 = vsel %vm573, %v552, 0
        %v992 = vsel %vm573, %v553, 0
        %v995 = vsel %vm573, %v554, 0
        %v998 = vsel %vm573, %v555, 0
        %v1001 = vsel %vm573, %v556, 0
        %1003 = vmatprep.subr.bf16.mxu0 0
        %1004 = vmatpush1.bf16.xpose.msra.mxu0 %v980
        %1005 = vmatprep.subr.bf16.mxu0 0
        %1006 = vmatpush1.bf16.xpose.msra.mxu0 %v983
        %1007 = vmatprep.subr.bf16.mxu0 0
        %1008 = vmatpush1.bf16.xpose.msra.mxu0 %v986
        %1009 = vmatprep.subr.bf16.mxu0 0
        %1010 = vmatpush1.bf16.xpose.msra.mxu0 %v989
        %1011 = vmatprep.subr.bf16.mxu0 0
        %1012 = vmatpush1.bf16.xpose.msra.mxu0 %v992
        %1013 = vmatprep.subr.bf16.mxu0 0
        %1014 = vmatpush1.bf16.xpose.msra.mxu0 %v995
        %1015 = vmatprep.subr.bf16.mxu0 0
        %1016 = vmatpush1.bf16.xpose.msra.mxu0 %v998
        %1017 = vmatprep.subr.bf16.mxu0 0
        %1018 = vmatpush1.bf16.xpose.msra.mxu0 %v1001
        %1019 = vmatprep.subr.bf16.mxu0 0
        %1020 = vmatpush1.bf16.xpose.msra.mxu0 0
        %1021 = vmatprep.subr.bf16.mxu0 0
        %1022 = vmatpush1.bf16.xpose.msra.mxu0 0
        %1023 = vmatprep.subr.bf16.mxu0 0
        %1024 = vmatpush1.bf16.xpose.msra.mxu0 0
        %1025 = vmatprep.subr.bf16.mxu0 0
        %1026 = vmatpush1.bf16.xpose.msra.mxu0 0
        %1027 = vmatprep.subr.bf16.mxu0 0
        %1028 = vmatpush1.bf16.xpose.msra.mxu0 0
        %1029 = vmatprep.subr.bf16.mxu0 0
        %1030 = vmatpush1.bf16.xpose.msra.mxu0 0
        %1031 = vmatprep.subr.bf16.mxu0 0
        %1032 = vmatpush1.bf16.xpose.msra.mxu0 0
        %1033 = vmatprep.subr.bf16.mxu0 0
        %1034 = vmatpush1.bf16.xpose.msra.mxu0 0
        %1035 = vmatprep.mubr.bf16.mxu0 0
        %1036 = vmatmul.mubr.bf16.gmra.mrb[0].mxu0 %v977
        %v1037 = vpop.f32.mrb[0].mxu0
        %v1038 = vadd.f32 0.0, %v1037
        %v1039 = vpop.f32.mrb[0].mxu0
        %v1040 = vpop.f32.mrb[0].mxu0
        %v1041 = vpop.f32.mrb[0].mxu0
        %1042 = vdwg.mxu0
        %v1044 = vsel %vm573, %v572, 0
        %v1047 = vsel %vm573, %v557, 0
        %v1050 = vsel %vm573, %v558, 0
        %v1053 = vsel %vm573, %v559, 0
        %v1056 = vsel %vm573, %v560, 0
        %v1059 = vsel %vm573, %v561, 0
        %v1062 = vsel %vm573, %v562, 0
        %v1065 = vsel %vm573, %v563, 0
        %v1068 = vsel %vm573, %v564, 0
        %1070 = vmatprep.subr.bf16.mxu0 0
        %1071 = vmatpush1.bf16.xpose.msra.mxu0 %v1047
        %1072 = vmatprep.subr.bf16.mxu0 0
        %1073 = vmatpush1.bf16.xpose.msra.mxu0 %v1050
        %1074 = vmatprep.subr.bf16.mxu0 0
        %1075 = vmatpush1.bf16.xpose.msra.mxu0 %v1053
        %1076 = vmatprep.subr.bf16.mxu0 0
        %1077 = vmatpush1.bf16.xpose.msra.mxu0 %v1056
        %1078 = vmatprep.subr.bf16.mxu0 0
        %1079 = vmatpush1.bf16.xpose.msra.mxu0 %v1059
        %1080 = vmatprep.subr.bf16.mxu0 0
        %1081 = vmatpush1.bf16.xpose.msra.mxu0 %v1062
        %1082 = vmatprep.subr.bf16.mxu0 0
        %1083 = vmatpush1.bf16.xpose.msra.mxu0 %v1065
        %1084 = vmatprep.subr.bf16.mxu0 0
        %1085 = vmatpush1.bf16.xpose.msra.mxu0 %v1068
        %1086 = vmatprep.subr.bf16.mxu0 0
        %1087 = vmatpush1.bf16.xpose.msra.mxu0 0
        %1088 = vmatprep.subr.bf16.mxu0 0
        %1089 = vmatpush1.bf16.xpose.msra.mxu0 0
        %1090 = vmatprep.subr.bf16.mxu0 0
        %1091 = vmatpush1.bf16.xpose.msra.mxu0 0
        %1092 = vmatprep.subr.bf16.mxu0 0
        %1093 = vmatpush1.bf16.xpose.msra.mxu0 0
        %1094 = vmatprep.subr.bf16.mxu0 0
        %1095 = vmatpush1.bf16.xpose.msra.mxu0 0
        %1096 = vmatprep.subr.bf16.mxu0 0
        %1097 = vmatpush1.bf16.xpose.msra.mxu0 0
        %1098 = vmatprep.subr.bf16.mxu0 0
        %1099 = vmatpush1.bf16.xpose.msra.mxu0 0
        %1100 = vmatprep.subr.bf16.mxu0 0
        %1101 = vmatpush1.bf16.xpose.msra.mxu0 0
        %1102 = vmatprep.mubr.bf16.mxu0 0
        %1103 = vmatmul.mubr.bf16.gmra.mrb[0].mxu0 %v1044
        %v1104 = vpop.f32.mrb[0].mxu0
        %v1105 = vadd.f32 0.0, %v1104
        %v1106 = vpop.f32.mrb[0].mxu0
        %v1107 = vpop.f32.mrb[0].mxu0
        %v1108 = vpop.f32.mrb[0].mxu0
        %1109 = vdwg.mxu0
        %v1110 = vld [vmem:[%s305] sm:$0xff]
        %v1112 = vcombine.high %v1110, %v1110
        %v1114 = vunpack.c.l.s4 1966171168
        %v1115 = vunpack.c.0.s8 %v1114
        %v1116 = vlaneseq
        %v1117 = vshrl.u32 %v1116, 7
        %v1118 = vsub.s32 %v1115, %v1117
        %v1119 = vrot.slane %v1110, %v1118
        %v1121 = vunpack.c.l.s4 1966171168
        %v1122 = vunpack.c.0.s8 %v1121
        %v1123 = vlaneseq
        %v1124 = vshrl.u32 %v1123, 7
        %v1125 = vsub.s32 %v1122, %v1124
        %v1126 = vrot.slane %v1112, %v1125
        %v1127 = vcombine.high %v1119, %v1119
        %v1128 = vcombine.high %v1126, %v1126
        %v1130 = vunpack.c.l.s4 1966171168
        %v1131 = vunpack.c.0.s8 %v1130
        %v1132 = vlaneseq
        %v1133 = vshrl.u32 %v1132, 7
        %v1134 = vsub.s32 %v1131, %v1133
        %v1135 = vrot.slane %v1119, %v1134
        %v1137 = vunpack.c.l.s4 1966171168
        %v1138 = vunpack.c.0.s8 %v1137
        %v1139 = vlaneseq
        %v1140 = vshrl.u32 %v1139, 7
        %v1141 = vsub.s32 %v1138, %v1140
        %v1142 = vrot.slane %v1126, %v1141
        %v1144 = vunpack.c.l.s4 1966171168
        %v1145 = vunpack.c.0.s8 %v1144
        %v1146 = vlaneseq
        %v1147 = vshrl.u32 %v1146, 7
        %v1148 = vsub.s32 %v1145, %v1147
        %v1149 = vrot.slane %v1127, %v1148
        %v1151 = vunpack.c.l.s4 1966171168
        %v1152 = vunpack.c.0.s8 %v1151
        %v1153 = vlaneseq
        %v1154 = vshrl.u32 %v1153, 7
        %v1155 = vsub.s32 %v1152, %v1154
        %v1156 = vrot.slane %v1128, %v1155
        %v1157 = vcombine.high %v1135, %v1135
        %v1158 = vcombine.high %v1142, %v1142
        %v1159 = vcombine.high %v1149, %v1149
        %v1160 = vcombine.high %v1156, %v1156
        %v1161 = vlaneseq
        %v1162 = vshrl.u32 %v1161, 7
        %v1163 = vsub.s32 0, %v1162
        %v1164 = vrot.slane %v1135, %v1163
        %v1165 = vlaneseq
        %v1166 = vshrl.u32 %v1165, 7
        %v1167 = vsub.s32 0, %v1166
        %v1168 = vrot.slane %v1149, %v1167
        %v1169 = vlaneseq
        %v1170 = vshrl.u32 %v1169, 7
        %v1171 = vsub.s32 0, %v1170
        %v1172 = vrot.slane %v1157, %v1171
        %v1173 = vlaneseq
        %v1174 = vshrl.u32 %v1173, 7
        %v1175 = vsub.s32 0, %v1174
        %v1176 = vrot.slane %v1159, %v1175
        %v1177 = vlaneseq
        %v1178 = vshrl.u32 %v1177, 7
        %v1179 = vsub.s32 0, %v1178
        %v1180 = vrot.slane %v1142, %v1179
        %v1181 = vlaneseq
        %v1182 = vshrl.u32 %v1181, 7
        %v1183 = vsub.s32 0, %v1182
        %v1184 = vrot.slane %v1156, %v1183
        %v1185 = vlaneseq
        %v1186 = vshrl.u32 %v1185, 7
        %v1187 = vsub.s32 0, %v1186
        %v1188 = vrot.slane %v1158, %v1187
        %v1189 = vlaneseq
        %v1190 = vshrl.u32 %v1189, 7
        %v1191 = vsub.s32 0, %v1190
        %v1192 = vrot.slane %v1160, %v1191
        %v1201 = vmul.f32 %v636, %v1164
        %v1202 = vmul.f32 %v703, %v1168
        %v1203 = vmul.f32 %v770, %v1172
        %v1204 = vmul.f32 %v837, %v1176
        %v1205 = vmul.f32 %v904, %v1180
        %v1206 = vmul.f32 %v971, %v1184
        %v1207 = vmul.f32 %v1038, %v1188
        %v1208 = vmul.f32 %v1105, %v1192
        %p1209 = scmp.eq.s32.totalorder %s19, 0
        // Predicated region
        $region49: #{tpu_custom_call.1} parent=47 // pred_check
          %p1210 = pneg %p1209
        $region50: #{tpu_custom_call.1} parent=47 // pred_check_branch
          %1212 = sbr.rel (%p1210) target = $region52
        $region51: #{tpu_custom_call.1} parent=47 // pred_region
          %1213 = vst [vmem:[#allocation3] sm:$0x3] 0.0
        $region52: #{tpu_custom_call.1} parent=47 // pred_fallthru
          _
        %v1214 = vld [vmem:[#allocation3] sm:$0x3]
        %vm1215 = vcmask 1041408
        %v1216 = vsel %vm1215, %v1201, 0.0
        %v1217 = vsel %vm1215, %v1202, 0.0
        %v1218 = vadd.f32 %v1216, %v1217
        %v1219 = vsel %vm1215, %v1203, 0.0
        %v1220 = vadd.f32 %v1218, %v1219
        %v1221 = vsel %vm1215, %v1204, 0.0
        %v1222 = vadd.f32 %v1220, %v1221
        %v1223 = vsel %vm1215, %v1205, 0.0
        %v1224 = vadd.f32 %v1222, %v1223
        %v1225 = vsel %vm1215, %v1206, 0.0
        %v1226 = vadd.f32 %v1224, %v1225
        %v1227 = vsel %vm1215, %v1207, 0.0
        %v1228 = vadd.f32 %v1226, %v1227
        %v1229 = vsel %vm1215, %v1208, 0.0
        %v1230 = vadd.f32 %v1228, %v1229
        %v1231 = vadd.f32 %v1214, %v1230
        %1232 = vst [vmem:[#allocation3] sm:$0x3] %v1231
        %v1241 = vcombine.low %v1201, %v1202
        %v1242 = vcombine.low %v1203, %v1204
        %v1244 = vunpack.c.l.s4 1983009808
        %v1245 = vunpack.c.0.s8 %v1244
        %v1246 = vlaneseq
        %v1247 = vshrl.u32 %v1246, 7
        %v1248 = vsub.s32 %v1245, %v1247
        %v1249 = vrot.slane %v1241, %v1248
        %v1251 = vunpack.c.l.s4 1983009808
        %v1252 = vunpack.c.0.s8 %v1251
        %v1253 = vlaneseq
        %v1254 = vshrl.u32 %v1253, 7
        %v1255 = vsub.s32 %v1252, %v1254
        %v1256 = vrot.slane %v1242, %v1255
        %v1257 = vcombine.low %v1249, %v1256
        %v1258 = vcombine.low %v1205, %v1206
        %v1259 = vcombine.low %v1207, %v1208
        %v1261 = vunpack.c.l.s4 1983009808
        %v1262 = vunpack.c.0.s8 %v1261
        %v1263 = vlaneseq
        %v1264 = vshrl.u32 %v1263, 7
        %v1265 = vsub.s32 %v1262, %v1264
        %v1266 = vrot.slane %v1258, %v1265
        %v1268 = vunpack.c.l.s4 1983009808
        %v1269 = vunpack.c.0.s8 %v1268
        %v1270 = vlaneseq
        %v1271 = vshrl.u32 %v1270, 7
        %v1272 = vsub.s32 %v1269, %v1271
        %v1273 = vrot.slane %v1259, %v1272
        %v1274 = vcombine.low %v1266, %v1273
        %s1277 = scalar_lea.vmem [#allocation2], %s307
        %1278 = vst [vmem:[%s1277] sm:$0xff] %v1257
        %1279 = vst [vmem:[%s1277 + $0x8] sm:$0xff] %v1274
        %p1280 = scmp.eq.s32.totalorder %s19, 1
        // Predicated region
        $region53: #{tpu_custom_call.1} parent=47 // pred_check
          %p1281 = pneg %p1280
        $region54: #{tpu_custom_call.1} parent=47 // pred_check_branch
          %1283 = sbr.rel (%p1281) target = $region56
        $region55: #{tpu_custom_call.1} parent=47 // pred_region
          %v1284 = vld [vmem:[#allocation2] sm:$0xff]
          %v1285 = vld [vmem:[#allocation2 + $0x8] sm:$0xff]
          %v1286 = vld [vmem:[#allocation2 + $0x10] sm:$0xff]
          %v1287 = vld [vmem:[#allocation2 + $0x18] sm:$0xff]
          %v1288 = vld [vmem:[%s3] sm:$0xff]
          %v1289 = vld [vmem:[%s4] sm:$0xff]
          %v1290 = vld [vmem:[%s4 + $0x8] sm:$0xff]
          %v1291 = vld [vmem:[%s4 + $0x10] sm:$0xff]
          %v1292 = vld [vmem:[%s4 + $0x18] sm:$0xff]
          %v1293 = vld [vmem:[%s4 + $0x20] sm:$0xff]
          %v1294 = vld [vmem:[%s4 + $0x28] sm:$0xff]
          %v1295 = vld [vmem:[%s4 + $0x30] sm:$0xff]
          %v1296 = vld [vmem:[%s4 + $0x38] sm:$0xff]
          %v1297 = vld [vmem:[%s4 + $0x40] sm:$0xff]
          %v1298 = vld [vmem:[%s4 + $0x48] sm:$0xff]
          %v1299 = vld [vmem:[%s4 + $0x50] sm:$0xff]
          %v1300 = vld [vmem:[%s4 + $0x58] sm:$0xff]
          %v1301 = vld [vmem:[%s4 + $0x60] sm:$0xff]
          %v1302 = vld [vmem:[%s4 + $0x68] sm:$0xff]
          %v1303 = vld [vmem:[%s4 + $0x70] sm:$0xff]
          %v1304 = vld [vmem:[%s4 + $0x78] sm:$0xff]
          %v1305 = vld [vmem:[%s5] sm:$0x3]
          %v1306 = vld [vmem:[%s6] sm:$0xff]
          %v1307 = vld [vmem:[%s6 + $0x8] sm:$0xff]
          %v1308 = vld [vmem:[%s6 + $0x10] sm:$0xff]
          %v1309 = vld [vmem:[%s6 + $0x18] sm:$0xff]
          %v1310 = vld [vmem:[#allocation3] sm:$0x3]
          %v1311 = vmul.f32 %v1310, 0.125
          %v1312 = vmul.f32 %v1311, %v1311
          %1313 = vmatprep.subr.mxu0 0.0
          %1314 = vmatpush1.msra.mxu0 %v1289
          %1315 = vmatprep.subr.mxu0 0.0
          %1316 = vmatpush1.msra.mxu0 %v1290
          %1317 = vmatprep.subr.mxu0 0.0
          %1318 = vmatpush1.msra.mxu0 %v1291
          %1319 = vmatprep.subr.mxu0 0.0
          %1320 = vmatpush1.msra.mxu0 %v1292
          %1321 = vmatprep.subr.mxu0 0.0
          %1322 = vmatpush1.msra.mxu0 %v1293
          %1323 = vmatprep.subr.mxu0 0.0
          %1324 = vmatpush1.msra.mxu0 %v1294
          %1325 = vmatprep.subr.mxu0 0.0
          %1326 = vmatpush1.msra.mxu0 %v1295
          %1327 = vmatprep.subr.mxu0 0.0
          %1328 = vmatpush1.msra.mxu0 %v1296
          %1329 = vmatprep.subr.mxu0 0.0
          %1330 = vmatpush1.msra.mxu0 %v1297
          %1331 = vmatprep.subr.mxu0 0.0
          %1332 = vmatpush1.msra.mxu0 %v1298
          %1333 = vmatprep.subr.mxu0 0.0
          %1334 = vmatpush1.msra.mxu0 %v1299
          %1335 = vmatprep.subr.mxu0 0.0
          %1336 = vmatpush1.msra.mxu0 %v1300
          %1337 = vmatprep.subr.mxu0 0.0
          %1338 = vmatpush1.msra.mxu0 %v1301
          %1339 = vmatprep.subr.mxu0 0.0
          %1340 = vmatpush1.msra.mxu0 %v1302
          %1341 = vmatprep.subr.mxu0 0.0
          %1342 = vmatpush1.msra.mxu0 %v1303
          %1343 = vmatprep.subr.mxu0 0.0
          %1344 = vmatpush1.msra.mxu0 %v1304
          %1345 = vmatprep.subr.mxu0 0.0
          %1346 = vmatpush1.msra.mxu0 0.0
          %1347 = vmatprep.subr.mxu0 0.0
          %1348 = vmatpush1.msra.mxu0 0.0
          %1349 = vmatprep.subr.mxu0 0.0
          %1350 = vmatpush1.msra.mxu0 0.0
          %1351 = vmatprep.subr.mxu0 0.0
          %1352 = vmatpush1.msra.mxu0 0.0
          %1353 = vmatprep.subr.mxu0 0.0
          %1354 = vmatpush1.msra.mxu0 0.0
          %1355 = vmatprep.subr.mxu0 0.0
          %1356 = vmatpush1.msra.mxu0 0.0
          %1357 = vmatprep.subr.mxu0 0.0
          %1358 = vmatpush1.msra.mxu0 0.0
          %1359 = vmatprep.subr.mxu0 0.0
          %1360 = vmatpush1.msra.mxu0 0.0
          %1361 = vmatprep.subr.mxu0 0.0
          %1362 = vmatpush1.msra.mxu0 0.0
          %1363 = vmatprep.subr.mxu0 0.0
          %1364 = vmatpush1.msra.mxu0 0.0
          %1365 = vmatprep.subr.mxu0 0.0
          %1366 = vmatpush1.msra.mxu0 0.0
          %1367 = vmatprep.subr.mxu0 0.0
          %1368 = vmatpush1.msra.mxu0 0.0
          %1369 = vmatprep.subr.mxu0 0.0
          %1370 = vmatpush1.msra.mxu0 0.0
          %1371 = vmatprep.subr.mxu0 0.0
          %1372 = vmatpush1.msra.mxu0 0.0
          %1373 = vmatprep.subr.mxu0 0.0
          %1374 = vmatpush1.msra.mxu0 0.0
          %1375 = vmatprep.subr.mxu0 0.0
          %1376 = vmatpush1.msra.mxu0 0.0
          %1377 = vmatprep.mubr.f32.mxu0 0.0
          %1378 = vmatmul.mubr.f32.gmra.mrb[0].mxu0 %v1312
          %v1379 = vpop.f32.mrb[0].mxu0
          %v1380 = vadd.f32 0.0, %v1379
          %v1381 = vpop.f32.mrb[0].mxu0
          %1382 = vdwg.mxu0
          %vm1383 = vcmask 64512
          %v1385 = vsel %vm1383, %v1380, 0
          %1387 = vmatprep.subr.mxu0 0.0
          %1388 = vmatpush1.msra.mxu0 %v1288
          %1389 = vmatprep.subr.mxu0 0.0
          %1390 = vmatpush1.msra.mxu0 0.0
          %1391 = vmatprep.subr.mxu0 0.0
          %1392 = vmatpush1.msra.mxu0 0.0
          %1393 = vmatprep.subr.mxu0 0.0
          %1394 = vmatpush1.msra.mxu0 0.0
          %1395 = vmatprep.subr.mxu0 0.0
          %1396 = vmatpush1.msra.mxu0 0.0
          %1397 = vmatprep.subr.mxu0 0.0
          %1398 = vmatpush1.msra.mxu0 0.0
          %1399 = vmatprep.subr.mxu0 0.0
          %1400 = vmatpush1.msra.mxu0 0.0
          %1401 = vmatprep.subr.mxu0 0.0
          %1402 = vmatpush1.msra.mxu0 0.0
          %1403 = vmatprep.subr.mxu0 0.0
          %1404 = vmatpush1.msra.mxu0 0.0
          %1405 = vmatprep.subr.mxu0 0.0
          %1406 = vmatpush1.msra.mxu0 0.0
          %1407 = vmatprep.subr.mxu0 0.0
          %1408 = vmatpush1.msra.mxu0 0.0
          %1409 = vmatprep.subr.mxu0 0.0
          %1410 = vmatpush1.msra.mxu0 0.0
          %1411 = vmatprep.subr.mxu0 0.0
          %1412 = vmatpush1.msra.mxu0 0.0
          %1413 = vmatprep.subr.mxu0 0.0
          %1414 = vmatpush1.msra.mxu0 0.0
          %1415 = vmatprep.subr.mxu0 0.0
          %1416 = vmatpush1.msra.mxu0 0.0
          %1417 = vmatprep.subr.mxu0 0.0
          %1418 = vmatpush1.msra.mxu0 0.0
          %1419 = vmatprep.subr.mxu0 0.0
          %1420 = vmatpush1.msra.mxu0 0.0
          %1421 = vmatprep.subr.mxu0 0.0
          %1422 = vmatpush1.msra.mxu0 0.0
          %1423 = vmatprep.subr.mxu0 0.0
          %1424 = vmatpush1.msra.mxu0 0.0
          %1425 = vmatprep.subr.mxu0 0.0
          %1426 = vmatpush1.msra.mxu0 0.0
          %1427 = vmatprep.subr.mxu0 0.0
          %1428 = vmatpush1.msra.mxu0 0.0
          %1429 = vmatprep.subr.mxu0 0.0
          %1430 = vmatpush1.msra.mxu0 0.0
          %1431 = vmatprep.subr.mxu0 0.0
          %1432 = vmatpush1.msra.mxu0 0.0
          %1433 = vmatprep.subr.mxu0 0.0
          %1434 = vmatpush1.msra.mxu0 0.0
          %1435 = vmatprep.subr.mxu0 0.0
          %1436 = vmatpush1.msra.mxu0 0.0
          %1437 = vmatprep.subr.mxu0 0.0
          %1438 = vmatpush1.msra.mxu0 0.0
          %1439 = vmatprep.subr.mxu0 0.0
          %1440 = vmatpush1.msra.mxu0 0.0
          %1441 = vmatprep.subr.mxu0 0.0
          %1442 = vmatpush1.msra.mxu0 0.0
          %1443 = vmatprep.subr.mxu0 0.0
          %1444 = vmatpush1.msra.mxu0 0.0
          %1445 = vmatprep.subr.mxu0 0.0
          %1446 = vmatpush1.msra.mxu0 0.0
          %1447 = vmatprep.subr.mxu0 0.0
          %1448 = vmatpush1.msra.mxu0 0.0
          %1449 = vmatprep.subr.mxu0 0.0
          %1450 = vmatpush1.msra.mxu0 0.0
          %1451 = vmatprep.mubr.f32.mxu0 0.0
          %1452 = vmatmul.mubr.f32.gmra.mrb[0].mxu0 %v1385
          %v1453 = vpop.f32.mrb[0].mxu0
          %v1454 = vadd.f32 0.0, %v1453
          %v1455 = vpop.f32.mrb[0].mxu0
          %1456 = vdwg.mxu0
          %v1457 = vadd.f32 %v1454, 1.0
          %v1458 = vrcp.pop %v1457
          %v1459 = vmul.f32 %v1454, %v1458
          %v1460 = vmul.f32 %v1311, %v1459
          %v1461 = vrsqrt.pop %v1454
          %v1462 = vmul.f32 %v1454, %v1461
          %vm1463 = vcmp.eq.f32.partialorder %v1454, inf
          %v1464 = vsel %vm1463, %v1454, %v1462
          %vm1465 = vcmp.eq.f32.partialorder %v1454, 0.0
          %v1466 = vand.u32 %v1454, 2147483648
          %v1467 = vsel %vm1465, %v1466, %v1464
          %v1468 = vadd.f32 %v1467, 1e-08
          %v1469 = vrcp.pop %v1468
          %v1470 = vmul.f32 %v1460, %v1469
          %vm1471 = vcmask 15360
          %v1473 = vsel %vm1471, %v1306, 0
          %v1476 = vsel %vm1471, %v1307, 0
          %v1479 = vsel %vm1471, %v1308, 0
          %v1482 = vsel %vm1471, %v1309, 0
          %v1485 = vsel %vm1215, %v1470, 0
          %1487 = vmatprep.subr.mxu0 0.0
          %1488 = vmatpush1.msra.mxu0 %v1485
          %1489 = vmatprep.subr.mxu0 0.0
          %1490 = vmatpush1.msra.mxu0 0.0
          %1491 = vmatprep.subr.mxu0 0.0
          %1492 = vmatpush1.msra.mxu0 0.0
          %1493 = vmatprep.subr.mxu0 0.0
          %1494 = vmatpush1.msra.mxu0 0.0
          %1495 = vmatprep.subr.mxu0 0.0
          %1496 = vmatpush1.msra.mxu0 0.0
          %1497 = vmatprep.subr.mxu0 0.0
          %1498 = vmatpush1.msra.mxu0 0.0
          %1499 = vmatprep.subr.mxu0 0.0
          %1500 = vmatpush1.msra.mxu0 0.0
          %1501 = vmatprep.subr.mxu0 0.0
          %1502 = vmatpush1.msra.mxu0 0.0
          %1503 = vmatprep.subr.mxu0 0.0
          %1504 = vmatpush1.msra.mxu0 0.0
          %1505 = vmatprep.subr.mxu0 0.0
          %1506 = vmatpush1.msra.mxu0 0.0
          %1507 = vmatprep.subr.mxu0 0.0
          %1508 = vmatpush1.msra.mxu0 0.0
          %1509 = vmatprep.subr.mxu0 0.0
          %1510 = vmatpush1.msra.mxu0 0.0
          %1511 = vmatprep.subr.mxu0 0.0
          %1512 = vmatpush1.msra.mxu0 0.0
          %1513 = vmatprep.subr.mxu0 0.0
          %1514 = vmatpush1.msra.mxu0 0.0
          %1515 = vmatprep.subr.mxu0 0.0
          %1516 = vmatpush1.msra.mxu0 0.0
          %1517 = vmatprep.subr.mxu0 0.0
          %1518 = vmatpush1.msra.mxu0 0.0
          %1519 = vmatprep.subr.mxu0 0.0
          %1520 = vmatpush1.msra.mxu0 0.0
          %1521 = vmatprep.subr.mxu0 0.0
          %1522 = vmatpush1.msra.mxu0 0.0
          %1523 = vmatprep.subr.mxu0 0.0
          %1524 = vmatpush1.msra.mxu0 0.0
          %1525 = vmatprep.subr.mxu0 0.0
          %1526 = vmatpush1.msra.mxu0 0.0
          %1527 = vmatprep.subr.mxu0 0.0
          %1528 = vmatpush1.msra.mxu0 0.0
          %1529 = vmatprep.subr.mxu0 0.0
          %1530 = vmatpush1.msra.mxu0 0.0
          %1531 = vmatprep.subr.mxu0 0.0
          %1532 = vmatpush1.msra.mxu0 0.0
          %1533 = vmatprep.subr.mxu0 0.0
          %1534 = vmatpush1.msra.mxu0 0.0
          %1535 = vmatprep.subr.mxu0 0.0
          %1536 = vmatpush1.msra.mxu0 0.0
          %1537 = vmatprep.subr.mxu0 0.0
          %1538 = vmatpush1.msra.mxu0 0.0
          %1539 = vmatprep.subr.mxu0 0.0
          %1540 = vmatpush1.msra.mxu0 0.0
          %1541 = vmatprep.subr.mxu0 0.0
          %1542 = vmatpush1.msra.mxu0 0.0
          %1543 = vmatprep.subr.mxu0 0.0
          %1544 = vmatpush1.msra.mxu0 0.0
          %1545 = vmatprep.subr.mxu0 0.0
          %1546 = vmatpush1.msra.mxu0 0.0
          %1547 = vmatprep.subr.mxu0 0.0
          %1548 = vmatpush1.msra.mxu0 0.0
          %1549 = vmatprep.subr.mxu0 0.0
          %1550 = vmatpush1.msra.mxu0 0.0
          %1551 = vmatprep.mubr.f32.mxu0 0.0
          %1552 = vmatmul.mubr.f32.gmra.mrb[0].mxu0 %v1473
          %v1553 = vpop.f32.mrb[0].mxu0
          %v1554 = vadd.f32 0.0, %v1553
          %v1555 = vpop.f32.mrb[0].mxu0
          %1556 = vmatprep.mubr.f32.mxu0 0.0
          %1557 = vmatmul.mubr.f32.gmra.mrb[0].mxu0 %v1476
          %v1558 = vpop.f32.mrb[0].mxu0
          %v1559 = vadd.f32 0.0, %v1558
          %v1560 = vpop.f32.mrb[0].mxu0
          %1561 = vmatprep.mubr.f32.mxu0 0.0
          %1562 = vmatmul.mubr.f32.gmra.mrb[0].mxu0 %v1479
          %v1563 = vpop.f32.mrb[0].mxu0
          %v1564 = vadd.f32 0.0, %v1563
          %v1565 = vpop.f32.mrb[0].mxu0
          %1566 = vmatprep.mubr.f32.mxu0 0.0
          %1567 = vmatmul.mubr.f32.gmra.mrb[0].mxu0 %v1482
          %v1568 = vpop.f32.mrb[0].mxu0
          %v1569 = vadd.f32 0.0, %v1568
          %v1570 = vpop.f32.mrb[0].mxu0
          %1571 = vdwg.mxu0
          %v1572 = vmul.f32 %v1554, %v1284
          %v1573 = vmul.f32 %v1559, %v1285
          %v1574 = vmul.f32 %v1564, %v1286
          %v1575 = vmul.f32 %v1569, %v1287
          %1576 = vmatprep.subr.mxu0 0.0
          %1577 = vmatpush1.msra.mxu0 %v1289
          %1578 = vmatprep.subr.mxu0 0.0
          %1579 = vmatpush1.msra.mxu0 %v1290
          %1580 = vmatprep.subr.mxu0 0.0
          %1581 = vmatpush1.msra.mxu0 %v1291
          %1582 = vmatprep.subr.mxu0 0.0
          %1583 = vmatpush1.msra.mxu0 %v1292
          %1584 = vmatprep.subr.mxu0 0.0
          %1585 = vmatpush1.msra.mxu0 %v1293
          %1586 = vmatprep.subr.mxu0 0.0
          %1587 = vmatpush1.msra.mxu0 %v1294
          %1588 = vmatprep.subr.mxu0 0.0
          %1589 = vmatpush1.msra.mxu0 %v1295
          %1590 = vmatprep.subr.mxu0 0.0
          %1591 = vmatpush1.msra.mxu0 %v1296
          %1592 = vmatprep.subr.mxu0 0.0
          %1593 = vmatpush1.msra.mxu0 %v1297
          %1594 = vmatprep.subr.mxu0 0.0
          %1595 = vmatpush1.msra.mxu0 %v1298
          %1596 = vmatprep.subr.mxu0 0.0
          %1597 = vmatpush1.msra.mxu0 %v1299
          %1598 = vmatprep.subr.mxu0 0.0
          %1599 = vmatpush1.msra.mxu0 %v1300
          %1600 = vmatprep.subr.mxu0 0.0
          %1601 = vmatpush1.msra.mxu0 %v1301
          %1602 = vmatprep.subr.mxu0 0.0
          %1603 = vmatpush1.msra.mxu0 %v1302
          %1604 = vmatprep.subr.mxu0 0.0
          %1605 = vmatpush1.msra.mxu0 %v1303
          %1606 = vmatprep.subr.mxu0 0.0
          %1607 = vmatpush1.msra.mxu0 %v1304
          %1608 = vmatprep.subr.mxu0 0.0
          %1609 = vmatpush1.msra.mxu0 0.0
          %1610 = vmatprep.subr.mxu0 0.0
          %1611 = vmatpush1.msra.mxu0 0.0
          %1612 = vmatprep.subr.mxu0 0.0
          %1613 = vmatpush1.msra.mxu0 0.0
          %1614 = vmatprep.subr.mxu0 0.0
          %1615 = vmatpush1.msra.mxu0 0.0
          %1616 = vmatprep.subr.mxu0 0.0
          %1617 = vmatpush1.msra.mxu0 0.0
          %1618 = vmatprep.subr.mxu0 0.0
          %1619 = vmatpush1.msra.mxu0 0.0
          %1620 = vmatprep.subr.mxu0 0.0
          %1621 = vmatpush1.msra.mxu0 0.0
          %1622 = vmatprep.subr.mxu0 0.0
          %1623 = vmatpush1.msra.mxu0 0.0
          %1624 = vmatprep.subr.mxu0 0.0
          %1625 = vmatpush1.msra.mxu0 0.0
          %1626 = vmatprep.subr.mxu0 0.0
          %1627 = vmatpush1.msra.mxu0 0.0
          %1628 = vmatprep.subr.mxu0 0.0
          %1629 = vmatpush1.msra.mxu0 0.0
          %1630 = vmatprep.subr.mxu0 0.0
          %1631 = vmatpush1.msra.mxu0 0.0
          %1632 = vmatprep.subr.mxu0 0.0
          %1633 = vmatpush1.msra.mxu0 0.0
          %1634 = vmatprep.subr.mxu0 0.0
          %1635 = vmatpush1.msra.mxu0 0.0
          %1636 = vmatprep.subr.mxu0 0.0
          %1637 = vmatpush1.msra.mxu0 0.0
          %1638 = vmatprep.subr.mxu0 0.0
          %1639 = vmatpush1.msra.mxu0 0.0
          %1640 = vmatprep.mubr.f32.mxu0 0.0
          %1641 = vmatmul.mubr.f32.gmra.mrb[0].mxu0 %v1572
          %v1642 = vpop.f32.mrb[0].mxu0
          %v1643 = vadd.f32 0.0, %v1642
          %v1644 = vpop.f32.mrb[0].mxu0
          %1645 = vmatprep.mubr.f32.mxu0 0.0
          %1646 = vmatmul.mubr.f32.gmra.mrb[0].mxu0 %v1573
          %v1647 = vpop.f32.mrb[0].mxu0
          %v1648 = vadd.f32 0.0, %v1647
          %v1649 = vpop.f32.mrb[0].mxu0
          %1650 = vmatprep.mubr.f32.mxu0 0.0
          %1651 = vmatmul.mubr.f32.gmra.mrb[0].mxu0 %v1574
          %v1652 = vpop.f32.mrb[0].mxu0
          %v1653 = vadd.f32 0.0, %v1652
          %v1654 = vpop.f32.mrb[0].mxu0
          %1655 = vmatprep.mubr.f32.mxu0 0.0
          %1656 = vmatmul.mubr.f32.gmra.mrb[0].mxu0 %v1575
          %v1657 = vpop.f32.mrb[0].mxu0
          %v1658 = vadd.f32 0.0, %v1657
          %v1659 = vpop.f32.mrb[0].mxu0
          %1660 = vdwg.mxu0
          %v1661 = vsel %vm1383, %v1643, -inf
          %1662 = vmax.xlane.f32.xlu0 %v1661
          %v1663 = vpop.xlane.xlu0 %1662
          %v1664 = vsel %vm1383, %v1648, -inf
          %1665 = vmax.xlane.f32.xlu0 %v1664
          %v1666 = vpop.xlane.xlu0 %1665
          %v1667 = vsel %vm1383, %v1653, -inf
          %1668 = vmax.xlane.f32.xlu0 %v1667
          %v1669 = vpop.xlane.xlu0 %1668
          %v1670 = vsel %vm1383, %v1658, -inf
          %1671 = vmax.xlane.f32.xlu0 %v1670
          %v1672 = vpop.xlane.xlu0 %1671
          %v1673 = vsub.f32 %v1643, %v1663
          %v1674 = vsub.f32 %v1648, %v1666
          %v1675 = vsub.f32 %v1653, %v1669
          %v1676 = vsub.f32 %v1658, %v1672
          %v1677 = vmul.f32 %v1673, 1.442695
          %v1678 = vpow.pop %v1677
          %v1679 = vmul.f32 %v1674, 1.442695
          %v1680 = vpow.pop %v1679
          %v1681 = vmul.f32 %v1675, 1.442695
          %v1682 = vpow.pop %v1681
          %v1683 = vmul.f32 %v1676, 1.442695
          %v1684 = vpow.pop %v1683
          %v1685 = vsel %vm1383, %v1678, 0.0
          %1686 = vadd.xlane.f32.xlu0 %v1685
          %v1687 = vpop.xlane.xlu0 %1686
          %v1688 = vsel %vm1383, %v1680, 0.0
          %1689 = vadd.xlane.f32.xlu0 %v1688
          %v1690 = vpop.xlane.xlu0 %1689
          %v1691 = vsel %vm1383, %v1682, 0.0
          %1692 = vadd.xlane.f32.xlu0 %v1691
          %v1693 = vpop.xlane.xlu0 %1692
          %v1694 = vsel %vm1383, %v1684, 0.0
          %1695 = vadd.xlane.f32.xlu0 %v1694
          %v1696 = vpop.xlane.xlu0 %1695
          %v1697 = vrcp.pop %v1687
          %v1698 = vmul.f32 %v1678, %v1697
          %v1699 = vrcp.pop %v1690
          %v1700 = vmul.f32 %v1680, %v1699
          %v1701 = vrcp.pop %v1693
          %v1702 = vmul.f32 %v1682, %v1701
          %v1703 = vrcp.pop %v1696
          %v1704 = vmul.f32 %v1684, %v1703
          %v1706 = vsel %vm1383, %v1698, 0
          %v1709 = vsel %vm1383, %v1700, 0
          %v1712 = vsel %vm1383, %v1702, 0
          %v1715 = vsel %vm1383, %v1704, 0
          %1717 = vmatprep.subr.mxu0 0.0
          %1718 = vmatpush1.msra.mxu0 %v1288
          %1719 = vmatprep.subr.mxu0 0.0
          %1720 = vmatpush1.msra.mxu0 0.0
          %1721 = vmatprep.subr.mxu0 0.0
          %1722 = vmatpush1.msra.mxu0 0.0
          %1723 = vmatprep.subr.mxu0 0.0
          %1724 = vmatpush1.msra.mxu0 0.0
          %1725 = vmatprep.subr.mxu0 0.0
          %1726 = vmatpush1.msra.mxu0 0.0
          %1727 = vmatprep.subr.mxu0 0.0
          %1728 = vmatpush1.msra.mxu0 0.0
          %1729 = vmatprep.subr.mxu0 0.0
          %1730 = vmatpush1.msra.mxu0 0.0
          %1731 = vmatprep.subr.mxu0 0.0
          %1732 = vmatpush1.msra.mxu0 0.0
          %1733 = vmatprep.subr.mxu0 0.0
          %1734 = vmatpush1.msra.mxu0 0.0
          %1735 = vmatprep.subr.mxu0 0.0
          %1736 = vmatpush1.msra.mxu0 0.0
          %1737 = vmatprep.subr.mxu0 0.0
          %1738 = vmatpush1.msra.mxu0 0.0
          %1739 = vmatprep.subr.mxu0 0.0
          %1740 = vmatpush1.msra.mxu0 0.0
          %1741 = vmatprep.subr.mxu0 0.0
          %1742 = vmatpush1.msra.mxu0 0.0
          %1743 = vmatprep.subr.mxu0 0.0
          %1744 = vmatpush1.msra.mxu0 0.0
          %1745 = vmatprep.subr.mxu0 0.0
          %1746 = vmatpush1.msra.mxu0 0.0
          %1747 = vmatprep.subr.mxu0 0.0
          %1748 = vmatpush1.msra.mxu0 0.0
          %1749 = vmatprep.subr.mxu0 0.0
          %1750 = vmatpush1.msra.mxu0 0.0
          %1751 = vmatprep.subr.mxu0 0.0
          %1752 = vmatpush1.msra.mxu0 0.0
          %1753 = vmatprep.subr.mxu0 0.0
          %1754 = vmatpush1.msra.mxu0 0.0
          %1755 = vmatprep.subr.mxu0 0.0
          %1756 = vmatpush1.msra.mxu0 0.0
          %1757 = vmatprep.subr.mxu0 0.0
          %1758 = vmatpush1.msra.mxu0 0.0
          %1759 = vmatprep.subr.mxu0 0.0
          %1760 = vmatpush1.msra.mxu0 0.0
          %1761 = vmatprep.subr.mxu0 0.0
          %1762 = vmatpush1.msra.mxu0 0.0
          %1763 = vmatprep.subr.mxu0 0.0
          %1764 = vmatpush1.msra.mxu0 0.0
          %1765 = vmatprep.subr.mxu0 0.0
          %1766 = vmatpush1.msra.mxu0 0.0
          %1767 = vmatprep.subr.mxu0 0.0
          %1768 = vmatpush1.msra.mxu0 0.0
          %1769 = vmatprep.subr.mxu0 0.0
          %1770 = vmatpush1.msra.mxu0 0.0
          %1771 = vmatprep.subr.mxu0 0.0
          %1772 = vmatpush1.msra.mxu0 0.0
          %1773 = vmatprep.subr.mxu0 0.0
          %1774 = vmatpush1.msra.mxu0 0.0
          %1775 = vmatprep.subr.mxu0 0.0
          %1776 = vmatpush1.msra.mxu0 0.0
          %1777 = vmatprep.subr.mxu0 0.0
          %1778 = vmatpush1.msra.mxu0 0.0
          %1779 = vmatprep.subr.mxu0 0.0
          %1780 = vmatpush1.msra.mxu0 0.0
          %1781 = vmatprep.mubr.f32.mxu0 0.0
          %1782 = vmatmul.mubr.f32.gmra.mrb[0].mxu0 %v1706
          %v1783 = vpop.f32.mrb[0].mxu0
          %v1784 = vadd.f32 0.0, %v1783
          %v1785 = vpop.f32.mrb[0].mxu0
          %1786 = vmatprep.mubr.f32.mxu0 0.0
          %1787 = vmatmul.mubr.f32.gmra.mrb[0].mxu0 %v1709
          %v1788 = vpop.f32.mrb[0].mxu0
          %v1789 = vadd.f32 0.0, %v1788
          %v1790 = vpop.f32.mrb[0].mxu0
          %1791 = vmatprep.mubr.f32.mxu0 0.0
          %1792 = vmatmul.mubr.f32.gmra.mrb[0].mxu0 %v1712
          %v1793 = vpop.f32.mrb[0].mxu0
          %v1794 = vadd.f32 0.0, %v1793
          %v1795 = vpop.f32.mrb[0].mxu0
          %1796 = vmatprep.mubr.f32.mxu0 0.0
          %1797 = vmatmul.mubr.f32.gmra.mrb[0].mxu0 %v1715
          %v1798 = vpop.f32.mrb[0].mxu0
          %v1799 = vadd.f32 0.0, %v1798
          %v1800 = vpop.f32.mrb[0].mxu0
          %1801 = vdwg.mxu0
          %v1802 = vmul.f32 %v1784, %v1284
          %v1803 = vmul.f32 %v1789, %v1285
          %v1804 = vmul.f32 %v1794, %v1286
          %v1805 = vmul.f32 %v1799, %v1287
          %v1807 = vsel %vm573, %v1305, 0
          %1809 = vmatprep.subr.mxu0 0.0
          %1810 = vmatpush1.msra.mxu0 %v1802
          %1811 = vmatprep.subr.mxu0 0.0
          %1812 = vmatpush1.msra.mxu0 %v1803
          %1813 = vmatprep.subr.mxu0 0.0
          %1814 = vmatpush1.msra.mxu0 %v1804
          %1815 = vmatprep.subr.mxu0 0.0
          %1816 = vmatpush1.msra.mxu0 %v1805
          %1817 = vmatprep.subr.mxu0 0.0
          %1818 = vmatpush1.msra.mxu0 0.0
          %1819 = vmatprep.subr.mxu0 0.0
          %1820 = vmatpush1.msra.mxu0 0.0
          %1821 = vmatprep.subr.mxu0 0.0
          %1822 = vmatpush1.msra.mxu0 0.0
          %1823 = vmatprep.subr.mxu0 0.0
          %1824 = vmatpush1.msra.mxu0 0.0
          %1825 = vmatprep.subr.mxu0 0.0
          %1826 = vmatpush1.msra.mxu0 0.0
          %1827 = vmatprep.subr.mxu0 0.0
          %1828 = vmatpush1.msra.mxu0 0.0
          %1829 = vmatprep.subr.mxu0 0.0
          %1830 = vmatpush1.msra.mxu0 0.0
          %1831 = vmatprep.subr.mxu0 0.0
          %1832 = vmatpush1.msra.mxu0 0.0
          %1833 = vmatprep.subr.mxu0 0.0
          %1834 = vmatpush1.msra.mxu0 0.0
          %1835 = vmatprep.subr.mxu0 0.0
          %1836 = vmatpush1.msra.mxu0 0.0
          %1837 = vmatprep.subr.mxu0 0.0
          %1838 = vmatpush1.msra.mxu0 0.0
          %1839 = vmatprep.subr.mxu0 0.0
          %1840 = vmatpush1.msra.mxu0 0.0
          %1841 = vmatprep.subr.mxu0 0.0
          %1842 = vmatpush1.msra.mxu0 0.0
          %1843 = vmatprep.subr.mxu0 0.0
          %1844 = vmatpush1.msra.mxu0 0.0
          %1845 = vmatprep.subr.mxu0 0.0
          %1846 = vmatpush1.msra.mxu0 0.0
          %1847 = vmatprep.subr.mxu0 0.0
          %1848 = vmatpush1.msra.mxu0 0.0
          %1849 = vmatprep.subr.mxu0 0.0
          %1850 = vmatpush1.msra.mxu0 0.0
          %1851 = vmatprep.subr.mxu0 0.0
          %1852 = vmatpush1.msra.mxu0 0.0
          %1853 = vmatprep.subr.mxu0 0.0
          %1854 = vmatpush1.msra.mxu0 0.0
          %1855 = vmatprep.subr.mxu0 0.0
          %1856 = vmatpush1.msra.mxu0 0.0
          %1857 = vmatprep.subr.mxu0 0.0
          %1858 = vmatpush1.msra.mxu0 0.0
          %1859 = vmatprep.subr.mxu0 0.0
          %1860 = vmatpush1.msra.mxu0 0.0
          %1861 = vmatprep.subr.mxu0 0.0
          %1862 = vmatpush1.msra.mxu0 0.0
          %1863 = vmatprep.subr.mxu0 0.0
          %1864 = vmatpush1.msra.mxu0 0.0
          %1865 = vmatprep.subr.mxu0 0.0
          %1866 = vmatpush1.msra.mxu0 0.0
          %1867 = vmatprep.subr.mxu0 0.0
          %1868 = vmatpush1.msra.mxu0 0.0
          %1869 = vmatprep.subr.mxu0 0.0
          %1870 = vmatpush1.msra.mxu0 0.0
          %1871 = vmatprep.subr.mxu0 0.0
          %1872 = vmatpush1.msra.mxu0 0.0
          %1873 = vmatprep.mubr.f32.mxu0 0.0
          %1874 = vmatmul.mubr.f32.gmra.mrb[0].mxu0 %v1807
          %v1875 = vpop.f32.mrb[0].mxu0
          %v1876 = vadd.f32 0.0, %v1875
          %v1877 = vpop.f32.mrb[0].mxu0
          %1878 = vdwg.mxu0
          %v1879 = vmul.f32 %v1876, %v1876
          %1880 = vmatprep.subr.mxu0 0.0
          %1881 = vmatpush1.msra.mxu0 %v1289
          %1882 = vmatprep.subr.mxu0 0.0
          %1883 = vmatpush1.msra.mxu0 %v1290
          %1884 = vmatprep.subr.mxu0 0.0
          %1885 = vmatpush1.msra.mxu0 %v1291
          %1886 = vmatprep.subr.mxu0 0.0
          %1887 = vmatpush1.msra.mxu0 %v1292
          %1888 = vmatprep.subr.mxu0 0.0
          %1889 = vmatpush1.msra.mxu0 %v1293
          %1890 = vmatprep.subr.mxu0 0.0
          %1891 = vmatpush1.msra.mxu0 %v1294
          %1892 = vmatprep.subr.mxu0 0.0
          %1893 = vmatpush1.msra.mxu0 %v1295
          %1894 = vmatprep.subr.mxu0 0.0
          %1895 = vmatpush1.msra.mxu0 %v1296
          %1896 = vmatprep.subr.mxu0 0.0
          %1897 = vmatpush1.msra.mxu0 %v1297
          %1898 = vmatprep.subr.mxu0 0.0
          %1899 = vmatpush1.msra.mxu0 %v1298
          %1900 = vmatprep.subr.mxu0 0.0
          %1901 = vmatpush1.msra.mxu0 %v1299
          %1902 = vmatprep.subr.mxu0 0.0
          %1903 = vmatpush1.msra.mxu0 %v1300
          %1904 = vmatprep.subr.mxu0 0.0
          %1905 = vmatpush1.msra.mxu0 %v1301
          %1906 = vmatprep.subr.mxu0 0.0
          %1907 = vmatpush1.msra.mxu0 %v1302
          %1908 = vmatprep.subr.mxu0 0.0
          %1909 = vmatpush1.msra.mxu0 %v1303
          %1910 = vmatprep.subr.mxu0 0.0
          %1911 = vmatpush1.msra.mxu0 %v1304
          %1912 = vmatprep.subr.mxu0 0.0
          %1913 = vmatpush1.msra.mxu0 0.0
          %1914 = vmatprep.subr.mxu0 0.0
          %1915 = vmatpush1.msra.mxu0 0.0
          %1916 = vmatprep.subr.mxu0 0.0
          %1917 = vmatpush1.msra.mxu0 0.0
          %1918 = vmatprep.subr.mxu0 0.0
          %1919 = vmatpush1.msra.mxu0 0.0
          %1920 = vmatprep.subr.mxu0 0.0
          %1921 = vmatpush1.msra.mxu0 0.0
          %1922 = vmatprep.subr.mxu0 0.0
          %1923 = vmatpush1.msra.mxu0 0.0
          %1924 = vmatprep.subr.mxu0 0.0
          %1925 = vmatpush1.msra.mxu0 0.0
          %1926 = vmatprep.subr.mxu0 0.0
          %1927 = vmatpush1.msra.mxu0 0.0
          %1928 = vmatprep.subr.mxu0 0.0
          %1929 = vmatpush1.msra.mxu0 0.0
          %1930 = vmatprep.subr.mxu0 0.0
          %1931 = vmatpush1.msra.mxu0 0.0
          %1932 = vmatprep.subr.mxu0 0.0
          %1933 = vmatpush1.msra.mxu0 0.0
          %1934 = vmatprep.subr.mxu0 0.0
          %1935 = vmatpush1.msra.mxu0 0.0
          %1936 = vmatprep.subr.mxu0 0.0
          %1937 = vmatpush1.msra.mxu0 0.0
          %1938 = vmatprep.subr.mxu0 0.0
          %1939 = vmatpush1.msra.mxu0 0.0
          %1940 = vmatprep.subr.mxu0 0.0
          %1941 = vmatpush1.msra.mxu0 0.0
          %1942 = vmatprep.subr.mxu0 0.0
          %1943 = vmatpush1.msra.mxu0 0.0
          %1944 = vmatprep.mubr.f32.mxu0 0.0
          %1945 = vmatmul.mubr.f32.gmra.mrb[0].mxu0 %v1879
          %v1946 = vpop.f32.mrb[0].mxu0
          %v1947 = vadd.f32 0.0, %v1946
          %v1948 = vpop.f32.mrb[0].mxu0
          %1949 = vdwg.mxu0
          %v1951 = vsel %vm1383, %v1947, 0
          %1953 = vmatprep.subr.mxu0 0.0
          %1954 = vmatpush1.msra.mxu0 %v1288
          %1955 = vmatprep.subr.mxu0 0.0
          %1956 = vmatpush1.msra.mxu0 0.0
          %1957 = vmatprep.subr.mxu0 0.0
          %1958 = vmatpush1.msra.mxu0 0.0
          %1959 = vmatprep.subr.mxu0 0.0
          %1960 = vmatpush1.msra.mxu0 0.0
          %1961 = vmatprep.subr.mxu0 0.0
          %1962 = vmatpush1.msra.mxu0 0.0
          %1963 = vmatprep.subr.mxu0 0.0
          %1964 = vmatpush1.msra.mxu0 0.0
          %1965 = vmatprep.subr.mxu0 0.0
          %1966 = vmatpush1.msra.mxu0 0.0
          %1967 = vmatprep.subr.mxu0 0.0
          %1968 = vmatpush1.msra.mxu0 0.0
          %1969 = vmatprep.subr.mxu0 0.0
          %1970 = vmatpush1.msra.mxu0 0.0
          %1971 = vmatprep.subr.mxu0 0.0
          %1972 = vmatpush1.msra.mxu0 0.0
          %1973 = vmatprep.subr.mxu0 0.0
          %1974 = vmatpush1.msra.mxu0 0.0
          %1975 = vmatprep.subr.mxu0 0.0
          %1976 = vmatpush1.msra.mxu0 0.0
          %1977 = vmatprep.subr.mxu0 0.0
          %1978 = vmatpush1.msra.mxu0 0.0
          %1979 = vmatprep.subr.mxu0 0.0
          %1980 = vmatpush1.msra.mxu0 0.0
          %1981 = vmatprep.subr.mxu0 0.0
          %1982 = vmatpush1.msra.mxu0 0.0
          %1983 = vmatprep.subr.mxu0 0.0
          %1984 = vmatpush1.msra.mxu0 0.0
          %1985 = vmatprep.subr.mxu0 0.0
          %1986 = vmatpush1.msra.mxu0 0.0
          %1987 = vmatprep.subr.mxu0 0.0
          %1988 = vmatpush1.msra.mxu0 0.0
          %1989 = vmatprep.subr.mxu0 0.0
          %1990 = vmatpush1.msra.mxu0 0.0
          %1991 = vmatprep.subr.mxu0 0.0
          %1992 = vmatpush1.msra.mxu0 0.0
          %1993 = vmatprep.subr.mxu0 0.0
          %1994 = vmatpush1.msra.mxu0 0.0
          %1995 = vmatprep.subr.mxu0 0.0
          %1996 = vmatpush1.msra.mxu0 0.0
          %1997 = vmatprep.subr.mxu0 0.0
          %1998 = vmatpush1.msra.mxu0 0.0
          %1999 = vmatprep.subr.mxu0 0.0
          %2000 = vmatpush1.msra.mxu0 0.0
          %2001 = vmatprep.subr.mxu0 0.0
          %2002 = vmatpush1.msra.mxu0 0.0
          %2003 = vmatprep.subr.mxu0 0.0
          %2004 = vmatpush1.msra.mxu0 0.0
          %2005 = vmatprep.subr.mxu0 0.0
          %2006 = vmatpush1.msra.mxu0 0.0
          %2007 = vmatprep.subr.mxu0 0.0
          %2008 = vmatpush1.msra.mxu0 0.0
          %2009 = vmatprep.subr.mxu0 0.0
          %2010 = vmatpush1.msra.mxu0 0.0
          %2011 = vmatprep.subr.mxu0 0.0
          %2012 = vmatpush1.msra.mxu0 0.0
          %2013 = vmatprep.subr.mxu0 0.0
          %2014 = vmatpush1.msra.mxu0 0.0
          %2015 = vmatprep.subr.mxu0 0.0
          %2016 = vmatpush1.msra.mxu0 0.0
          %2017 = vmatprep.mubr.f32.mxu0 0.0
          %2018 = vmatmul.mubr.f32.gmra.mrb[0].mxu0 %v1951
          %v2019 = vpop.f32.mrb[0].mxu0
          %v2020 = vadd.f32 0.0, %v2019
          %v2021 = vpop.f32.mrb[0].mxu0
          %2022 = vdwg.mxu0
          %v2023 = vadd.f32 %v2020, 1.0
          %v2024 = vrcp.pop %v2023
          %v2025 = vmul.f32 %v2020, %v2024
          %v2026 = vmul.f32 %v1876, %v2025
          %v2027 = vrsqrt.pop %v2020
          %v2028 = vmul.f32 %v2020, %v2027
          %vm2029 = vcmp.eq.f32.partialorder %v2020, inf
          %v2030 = vsel %vm2029, %v2020, %v2028
          %vm2031 = vcmp.eq.f32.partialorder %v2020, 0.0
          %v2032 = vand.u32 %v2020, 2147483648
          %v2033 = vsel %vm2031, %v2032, %v2030
          %v2034 = vadd.f32 %v2033, 1e-08
          %v2035 = vrcp.pop %v2034
          %v2036 = vmul.f32 %v2026, %v2035
          %v2038 = vsel %vm1215, %v2036, 0
          %2040 = vmatprep.subr.mxu0 0.0
          %2041 = vmatpush1.msra.mxu0 %v2038
          %2042 = vmatprep.subr.mxu0 0.0
          %2043 = vmatpush1.msra.mxu0 0.0
          %2044 = vmatprep.subr.mxu0 0.0
          %2045 = vmatpush1.msra.mxu0 0.0
          %2046 = vmatprep.subr.mxu0 0.0
          %2047 = vmatpush1.msra.mxu0 0.0
          %2048 = vmatprep.subr.mxu0 0.0
          %2049 = vmatpush1.msra.mxu0 0.0
          %2050 = vmatprep.subr.mxu0 0.0
          %2051 = vmatpush1.msra.mxu0 0.0
          %2052 = vmatprep.subr.mxu0 0.0
          %2053 = vmatpush1.msra.mxu0 0.0
          %2054 = vmatprep.subr.mxu0 0.0
          %2055 = vmatpush1.msra.mxu0 0.0
          %2056 = vmatprep.subr.mxu0 0.0
          %2057 = vmatpush1.msra.mxu0 0.0
          %2058 = vmatprep.subr.mxu0 0.0
          %2059 = vmatpush1.msra.mxu0 0.0
          %2060 = vmatprep.subr.mxu0 0.0
          %2061 = vmatpush1.msra.mxu0 0.0
          %2062 = vmatprep.subr.mxu0 0.0
          %2063 = vmatpush1.msra.mxu0 0.0
          %2064 = vmatprep.subr.mxu0 0.0
          %2065 = vmatpush1.msra.mxu0 0.0
          %2066 = vmatprep.subr.mxu0 0.0
          %2067 = vmatpush1.msra.mxu0 0.0
          %2068 = vmatprep.subr.mxu0 0.0
          %2069 = vmatpush1.msra.mxu0 0.0
          %2070 = vmatprep.subr.mxu0 0.0
          %2071 = vmatpush1.msra.mxu0 0.0
          %2072 = vmatprep.subr.mxu0 0.0
          %2073 = vmatpush1.msra.mxu0 0.0
          %2074 = vmatprep.subr.mxu0 0.0
          %2075 = vmatpush1.msra.mxu0 0.0
          %2076 = vmatprep.subr.mxu0 0.0
          %2077 = vmatpush1.msra.mxu0 0.0
          %2078 = vmatprep.subr.mxu0 0.0
          %2079 = vmatpush1.msra.mxu0 0.0
          %2080 = vmatprep.subr.mxu0 0.0
          %2081 = vmatpush1.msra.mxu0 0.0
          %2082 = vmatprep.subr.mxu0 0.0
          %2083 = vmatpush1.msra.mxu0 0.0
          %2084 = vmatprep.subr.mxu0 0.0
          %2085 = vmatpush1.msra.mxu0 0.0
          %2086 = vmatprep.subr.mxu0 0.0
          %2087 = vmatpush1.msra.mxu0 0.0
          %2088 = vmatprep.subr.mxu0 0.0
          %2089 = vmatpush1.msra.mxu0 0.0
          %2090 = vmatprep.subr.mxu0 0.0
          %2091 = vmatpush1.msra.mxu0 0.0
          %2092 = vmatprep.subr.mxu0 0.0
          %2093 = vmatpush1.msra.mxu0 0.0
          %2094 = vmatprep.subr.mxu0 0.0
          %2095 = vmatpush1.msra.mxu0 0.0
          %2096 = vmatprep.subr.mxu0 0.0
          %2097 = vmatpush1.msra.mxu0 0.0
          %2098 = vmatprep.subr.mxu0 0.0
          %2099 = vmatpush1.msra.mxu0 0.0
          %2100 = vmatprep.subr.mxu0 0.0
          %2101 = vmatpush1.msra.mxu0 0.0
          %2102 = vmatprep.subr.mxu0 0.0
          %2103 = vmatpush1.msra.mxu0 0.0
          %2104 = vmatprep.mubr.f32.mxu0 0.0
          %2105 = vmatmul.mubr.f32.gmra.mrb[0].mxu0 %v1473
          %v2106 = vpop.f32.mrb[0].mxu0
          %v2107 = vadd.f32 0.0, %v2106
          %v2108 = vpop.f32.mrb[0].mxu0
          %2109 = vmatprep.mubr.f32.mxu0 0.0
          %2110 = vmatmul.mubr.f32.gmra.mrb[0].mxu0 %v1476
          %v2111 = vpop.f32.mrb[0].mxu0
          %v2112 = vadd.f32 0.0, %v2111
          %v2113 = vpop.f32.mrb[0].mxu0
          %2114 = vmatprep.mubr.f32.mxu0 0.0
          %2115 = vmatmul.mubr.f32.gmra.mrb[0].mxu0 %v1479
          %v2116 = vpop.f32.mrb[0].mxu0
          %v2117 = vadd.f32 0.0, %v2116
          %v2118 = vpop.f32.mrb[0].mxu0
          %2119 = vmatprep.mubr.f32.mxu0 0.0
          %2120 = vmatmul.mubr.f32.gmra.mrb[0].mxu0 %v1482
          %v2121 = vpop.f32.mrb[0].mxu0
          %v2122 = vadd.f32 0.0, %v2121
          %v2123 = vpop.f32.mrb[0].mxu0
          %2124 = vdwg.mxu0
          %v2125 = vmul.f32 %v2107, %v1284
          %v2126 = vmul.f32 %v2112, %v1285
          %v2127 = vmul.f32 %v2117, %v1286
          %v2128 = vmul.f32 %v2122, %v1287
          %2129 = vmatprep.subr.mxu0 0.0
          %2130 = vmatpush1.msra.mxu0 %v1289
          %2131 = vmatprep.subr.mxu0 0.0
          %2132 = vmatpush1.msra.mxu0 %v1290
          %2133 = vmatprep.subr.mxu0 0.0
          %2134 = vmatpush1.msra.mxu0 %v1291
          %2135 = vmatprep.subr.mxu0 0.0
          %2136 = vmatpush1.msra.mxu0 %v1292
          %2137 = vmatprep.subr.mxu0 0.0
          %2138 = vmatpush1.msra.mxu0 %v1293
          %2139 = vmatprep.subr.mxu0 0.0
          %2140 = vmatpush1.msra.mxu0 %v1294
          %2141 = vmatprep.subr.mxu0 0.0
          %2142 = vmatpush1.msra.mxu0 %v1295
          %2143 = vmatprep.subr.mxu0 0.0
          %2144 = vmatpush1.msra.mxu0 %v1296
          %2145 = vmatprep.subr.mxu0 0.0
          %2146 = vmatpush1.msra.mxu0 %v1297
          %2147 = vmatprep.subr.mxu0 0.0
          %2148 = vmatpush1.msra.mxu0 %v1298
          %2149 = vmatprep.subr.mxu0 0.0
          %2150 = vmatpush1.msra.mxu0 %v1299
          %2151 = vmatprep.subr.mxu0 0.0
          %2152 = vmatpush1.msra.mxu0 %v1300
          %2153 = vmatprep.subr.mxu0 0.0
          %2154 = vmatpush1.msra.mxu0 %v1301
          %2155 = vmatprep.subr.mxu0 0.0
          %2156 = vmatpush1.msra.mxu0 %v1302
          %2157 = vmatprep.subr.mxu0 0.0
          %2158 = vmatpush1.msra.mxu0 %v1303
          %2159 = vmatprep.subr.mxu0 0.0
          %2160 = vmatpush1.msra.mxu0 %v1304
          %2161 = vmatprep.subr.mxu0 0.0
          %2162 = vmatpush1.msra.mxu0 0.0
          %2163 = vmatprep.subr.mxu0 0.0
          %2164 = vmatpush1.msra.mxu0 0.0
          %2165 = vmatprep.subr.mxu0 0.0
          %2166 = vmatpush1.msra.mxu0 0.0
          %2167 = vmatprep.subr.mxu0 0.0
          %2168 = vmatpush1.msra.mxu0 0.0
          %2169 = vmatprep.subr.mxu0 0.0
          %2170 = vmatpush1.msra.mxu0 0.0
          %2171 = vmatprep.subr.mxu0 0.0
          %2172 = vmatpush1.msra.mxu0 0.0
          %2173 = vmatprep.subr.mxu0 0.0
          %2174 = vmatpush1.msra.mxu0 0.0
          %2175 = vmatprep.subr.mxu0 0.0
          %2176 = vmatpush1.msra.mxu0 0.0
          %2177 = vmatprep.subr.mxu0 0.0
          %2178 = vmatpush1.msra.mxu0 0.0
          %2179 = vmatprep.subr.mxu0 0.0
          %2180 = vmatpush1.msra.mxu0 0.0
          %2181 = vmatprep.subr.mxu0 0.0
          %2182 = vmatpush1.msra.mxu0 0.0
          %2183 = vmatprep.subr.mxu0 0.0
          %2184 = vmatpush1.msra.mxu0 0.0
          %2185 = vmatprep.subr.mxu0 0.0
          %2186 = vmatpush1.msra.mxu0 0.0
          %2187 = vmatprep.subr.mxu0 0.0
          %2188 = vmatpush1.msra.mxu0 0.0
          %2189 = vmatprep.subr.mxu0 0.0
          %2190 = vmatpush1.msra.mxu0 0.0
          %2191 = vmatprep.subr.mxu0 0.0
          %2192 = vmatpush1.msra.mxu0 0.0
          %2193 = vmatprep.mubr.f32.mxu0 0.0
          %2194 = vmatmul.mubr.f32.gmra.mrb[0].mxu0 %v2125
          %v2195 = vpop.f32.mrb[0].mxu0
          %v2196 = vadd.f32 0.0, %v2195
          %v2197 = vpop.f32.mrb[0].mxu0
          %2198 = vmatprep.mubr.f32.mxu0 0.0
          %2199 = vmatmul.mubr.f32.gmra.mrb[0].mxu0 %v2126
          %v2200 = vpop.f32.mrb[0].mxu0
          %v2201 = vadd.f32 0.0, %v2200
          %v2202 = vpop.f32.mrb[0].mxu0
          %2203 = vmatprep.mubr.f32.mxu0 0.0
          %2204 = vmatmul.mubr.f32.gmra.mrb[0].mxu0 %v2127
          %v2205 = vpop.f32.mrb[0].mxu0
          %v2206 = vadd.f32 0.0, %v2205
          %v2207 = vpop.f32.mrb[0].mxu0
          %2208 = vmatprep.mubr.f32.mxu0 0.0
          %2209 = vmatmul.mubr.f32.gmra.mrb[0].mxu0 %v2128
          %v2210 = vpop.f32.mrb[0].mxu0
          %v2211 = vadd.f32 0.0, %v2210
          %v2212 = vpop.f32.mrb[0].mxu0
          %2213 = vdwg.mxu0
          %v2214 = vadd.f32 %v1643, %v2196
          %v2215 = vadd.f32 %v1648, %v2201
          %v2216 = vadd.f32 %v1653, %v2206
          %v2217 = vadd.f32 %v1658, %v2211
          %v2218 = vsel %vm1383, %v2214, -inf
          %2219 = vmax.xlane.f32.xlu0 %v2218
          %v2220 = vpop.xlane.xlu0 %2219
          %v2221 = vsel %vm1383, %v2215, -inf
          %2222 = vmax.xlane.f32.xlu0 %v2221
          %v2223 = vpop.xlane.xlu0 %2222
          %v2224 = vsel %vm1383, %v2216, -inf
          %2225 = vmax.xlane.f32.xlu0 %v2224
          %v2226 = vpop.xlane.xlu0 %2225
          %v2227 = vsel %vm1383, %v2217, -inf
          %2228 = vmax.xlane.f32.xlu0 %v2227
          %v2229 = vpop.xlane.xlu0 %2228
          %v2230 = vsub.f32 %v2214, %v2220
          %v2231 = vsub.f32 %v2215, %v2223
          %v2232 = vsub.f32 %v2216, %v2226
          %v2233 = vsub.f32 %v2217, %v2229
          %v2234 = vmul.f32 %v2230, 1.442695
          %v2235 = vpow.pop %v2234
          %v2236 = vmul.f32 %v2231, 1.442695
          %v2237 = vpow.pop %v2236
          %v2238 = vmul.f32 %v2232, 1.442695
          %v2239 = vpow.pop %v2238
          %v2240 = vmul.f32 %v2233, 1.442695
          %v2241 = vpow.pop %v2240
          %v2242 = vsel %vm1383, %v2235, 0.0
          %2243 = vadd.xlane.f32.xlu0 %v2242
          %v2244 = vpop.xlane.xlu0 %2243
          %v2245 = vsel %vm1383, %v2237, 0.0
          %2246 = vadd.xlane.f32.xlu0 %v2245
          %v2247 = vpop.xlane.xlu0 %2246
          %v2248 = vsel %vm1383, %v2239, 0.0
          %2249 = vadd.xlane.f32.xlu0 %v2248
          %v2250 = vpop.xlane.xlu0 %2249
          %v2251 = vsel %vm1383, %v2241, 0.0
          %2252 = vadd.xlane.f32.xlu0 %v2251
          %v2253 = vpop.xlane.xlu0 %2252
          %v2254 = vrcp.pop %v2244
          %v2255 = vmul.f32 %v2235, %v2254
          %v2256 = vrcp.pop %v2247
          %v2257 = vmul.f32 %v2237, %v2256
          %v2258 = vrcp.pop %v2250
          %v2259 = vmul.f32 %v2239, %v2258
          %v2260 = vrcp.pop %v2253
          %v2261 = vmul.f32 %v2241, %v2260
          %v2263 = vsel %vm1383, %v2255, 0
          %v2266 = vsel %vm1383, %v2257, 0
          %v2269 = vsel %vm1383, %v2259, 0
          %v2272 = vsel %vm1383, %v2261, 0
          %2274 = vmatprep.subr.mxu0 0.0
          %2275 = vmatpush1.msra.mxu0 %v1288
          %2276 = vmatprep.subr.mxu0 0.0
          %2277 = vmatpush1.msra.mxu0 0.0
          %2278 = vmatprep.subr.mxu0 0.0
          %2279 = vmatpush1.msra.mxu0 0.0
          %2280 = vmatprep.subr.mxu0 0.0
          %2281 = vmatpush1.msra.mxu0 0.0
          %2282 = vmatprep.subr.mxu0 0.0
          %2283 = vmatpush1.msra.mxu0 0.0
          %2284 = vmatprep.subr.mxu0 0.0
          %2285 = vmatpush1.msra.mxu0 0.0
          %2286 = vmatprep.subr.mxu0 0.0
          %2287 = vmatpush1.msra.mxu0 0.0
          %2288 = vmatprep.subr.mxu0 0.0
          %2289 = vmatpush1.msra.mxu0 0.0
          %2290 = vmatprep.subr.mxu0 0.0
          %2291 = vmatpush1.msra.mxu0 0.0
          %2292 = vmatprep.subr.mxu0 0.0
          %2293 = vmatpush1.msra.mxu0 0.0
          %2294 = vmatprep.subr.mxu0 0.0
          %2295 = vmatpush1.msra.mxu0 0.0
          %2296 = vmatprep.subr.mxu0 0.0
          %2297 = vmatpush1.msra.mxu0 0.0
          %2298 = vmatprep.subr.mxu0 0.0
          %2299 = vmatpush1.msra.mxu0 0.0
          %2300 = vmatprep.subr.mxu0 0.0
          %2301 = vmatpush1.msra.mxu0 0.0
          %2302 = vmatprep.subr.mxu0 0.0
          %2303 = vmatpush1.msra.mxu0 0.0
          %2304 = vmatprep.subr.mxu0 0.0
          %2305 = vmatpush1.msra.mxu0 0.0
          %2306 = vmatprep.subr.mxu0 0.0
          %2307 = vmatpush1.msra.mxu0 0.0
          %2308 = vmatprep.subr.mxu0 0.0
          %2309 = vmatpush1.msra.mxu0 0.0
          %2310 = vmatprep.subr.mxu0 0.0
          %2311 = vmatpush1.msra.mxu0 0.0
          %2312 = vmatprep.subr.mxu0 0.0
          %2313 = vmatpush1.msra.mxu0 0.0
          %2314 = vmatprep.subr.mxu0 0.0
          %2315 = vmatpush1.msra.mxu0 0.0
          %2316 = vmatprep.subr.mxu0 0.0
          %2317 = vmatpush1.msra.mxu0 0.0
          %2318 = vmatprep.subr.mxu0 0.0
          %2319 = vmatpush1.msra.mxu0 0.0
          %2320 = vmatprep.subr.mxu0 0.0
          %2321 = vmatpush1.msra.mxu0 0.0
          %2322 = vmatprep.subr.mxu0 0.0
          %2323 = vmatpush1.msra.mxu0 0.0
          %2324 = vmatprep.subr.mxu0 0.0
          %2325 = vmatpush1.msra.mxu0 0.0
          %2326 = vmatprep.subr.mxu0 0.0
          %2327 = vmatpush1.msra.mxu0 0.0
          %2328 = vmatprep.subr.mxu0 0.0
          %2329 = vmatpush1.msra.mxu0 0.0
          %2330 = vmatprep.subr.mxu0 0.0
          %2331 = vmatpush1.msra.mxu0 0.0
          %2332 = vmatprep.subr.mxu0 0.0
          %2333 = vmatpush1.msra.mxu0 0.0
          %2334 = vmatprep.subr.mxu0 0.0
          %2335 = vmatpush1.msra.mxu0 0.0
          %2336 = vmatprep.subr.mxu0 0.0
          %2337 = vmatpush1.msra.mxu0 0.0
          %2338 = vmatprep.mubr.f32.mxu0 0.0
          %2339 = vmatmul.mubr.f32.gmra.mrb[0].mxu0 %v2263
          %v2340 = vpop.f32.mrb[0].mxu0
          %v2341 = vadd.f32 0.0, %v2340
          %v2342 = vpop.f32.mrb[0].mxu0
          %2343 = vmatprep.mubr.f32.mxu0 0.0
          %2344 = vmatmul.mubr.f32.gmra.mrb[0].mxu0 %v2266
          %v2345 = vpop.f32.mrb[0].mxu0
          %v2346 = vadd.f32 0.0, %v2345
          %v2347 = vpop.f32.mrb[0].mxu0
          %2348 = vmatprep.mubr.f32.mxu0 0.0
          %2349 = vmatmul.mubr.f32.gmra.mrb[0].mxu0 %v2269
          %v2350 = vpop.f32.mrb[0].mxu0
          %v2351 = vadd.f32 0.0, %v2350
          %v2352 = vpop.f32.mrb[0].mxu0
          %2353 = vmatprep.mubr.f32.mxu0 0.0
          %2354 = vmatmul.mubr.f32.gmra.mrb[0].mxu0 %v2272
          %v2355 = vpop.f32.mrb[0].mxu0
          %v2356 = vadd.f32 0.0, %v2355
          %v2357 = vpop.f32.mrb[0].mxu0
          %2358 = vdwg.mxu0
          %v2359 = vmul.f32 %v2341, %v1284
          %v2360 = vmul.f32 %v2346, %v1285
          %v2361 = vmul.f32 %v2351, %v1286
          %v2362 = vmul.f32 %v2356, %v1287
          %2363 = vmatprep.subr.mxu0 0.0
          %2364 = vmatpush1.msra.mxu0 %v2359
          %2365 = vmatprep.subr.mxu0 0.0
          %2366 = vmatpush1.msra.mxu0 %v2360
          %2367 = vmatprep.subr.mxu0 0.0
          %2368 = vmatpush1.msra.mxu0 %v2361
          %2369 = vmatprep.subr.mxu0 0.0
          %2370 = vmatpush1.msra.mxu0 %v2362
          %2371 = vmatprep.subr.mxu0 0.0
          %2372 = vmatpush1.msra.mxu0 0.0
          %2373 = vmatprep.subr.mxu0 0.0
          %2374 = vmatpush1.msra.mxu0 0.0
          %2375 = vmatprep.subr.mxu0 0.0
          %2376 = vmatpush1.msra.mxu0 0.0
          %2377 = vmatprep.subr.mxu0 0.0
          %2378 = vmatpush1.msra.mxu0 0.0
          %2379 = vmatprep.subr.mxu0 0.0
          %2380 = vmatpush1.msra.mxu0 0.0
          %2381 = vmatprep.subr.mxu0 0.0
          %2382 = vmatpush1.msra.mxu0 0.0
          %2383 = vmatprep.subr.mxu0 0.0
          %2384 = vmatpush1.msra.mxu0 0.0
          %2385 = vmatprep.subr.mxu0 0.0
          %2386 = vmatpush1.msra.mxu0 0.0
          %2387 = vmatprep.subr.mxu0 0.0
          %2388 = vmatpush1.msra.mxu0 0.0
          %2389 = vmatprep.subr.mxu0 0.0
          %2390 = vmatpush1.msra.mxu0 0.0
          %2391 = vmatprep.subr.mxu0 0.0
          %2392 = vmatpush1.msra.mxu0 0.0
          %2393 = vmatprep.subr.mxu0 0.0
          %2394 = vmatpush1.msra.mxu0 0.0
          %2395 = vmatprep.subr.mxu0 0.0
          %2396 = vmatpush1.msra.mxu0 0.0
          %2397 = vmatprep.subr.mxu0 0.0
          %2398 = vmatpush1.msra.mxu0 0.0
          %2399 = vmatprep.subr.mxu0 0.0
          %2400 = vmatpush1.msra.mxu0 0.0
          %2401 = vmatprep.subr.mxu0 0.0
          %2402 = vmatpush1.msra.mxu0 0.0
          %2403 = vmatprep.subr.mxu0 0.0
          %2404 = vmatpush1.msra.mxu0 0.0
          %2405 = vmatprep.subr.mxu0 0.0
          %2406 = vmatpush1.msra.mxu0 0.0
          %2407 = vmatprep.subr.mxu0 0.0
          %2408 = vmatpush1.msra.mxu0 0.0
          %2409 = vmatprep.subr.mxu0 0.0
          %2410 = vmatpush1.msra.mxu0 0.0
          %2411 = vmatprep.subr.mxu0 0.0
          %2412 = vmatpush1.msra.mxu0 0.0
          %2413 = vmatprep.subr.mxu0 0.0
          %2414 = vmatpush1.msra.mxu0 0.0
          %2415 = vmatprep.subr.mxu0 0.0
          %2416 = vmatpush1.msra.mxu0 0.0
          %2417 = vmatprep.subr.mxu0 0.0
          %2418 = vmatpush1.msra.mxu0 0.0
          %2419 = vmatprep.subr.mxu0 0.0
          %2420 = vmatpush1.msra.mxu0 0.0
          %2421 = vmatprep.subr.mxu0 0.0
          %2422 = vmatpush1.msra.mxu0 0.0
          %2423 = vmatprep.subr.mxu0 0.0
          %2424 = vmatpush1.msra.mxu0 0.0
          %2425 = vmatprep.subr.mxu0 0.0
          %2426 = vmatpush1.msra.mxu0 0.0
          %2427 = vmatprep.mubr.f32.mxu0 0.0
          %2428 = vmatmul.mubr.f32.gmra.mrb[0].mxu0 %v1807
          %v2429 = vpop.f32.mrb[0].mxu0
          %v2430 = vadd.f32 0.0, %v2429
          %v2431 = vpop.f32.mrb[0].mxu0
          %2432 = vdwg.mxu0
          %v2433 = vmul.f32 %v2430, %v2430
          %2434 = vmatprep.subr.mxu0 0.0
          %2435 = vmatpush1.msra.mxu0 %v1289
          %2436 = vmatprep.subr.mxu0 0.0
          %2437 = vmatpush1.msra.mxu0 %v1290
          %2438 = vmatprep.subr.mxu0 0.0
          %2439 = vmatpush1.msra.mxu0 %v1291
          %2440 = vmatprep.subr.mxu0 0.0
          %2441 = vmatpush1.msra.mxu0 %v1292
          %2442 = vmatprep.subr.mxu0 0.0
          %2443 = vmatpush1.msra.mxu0 %v1293
          %2444 = vmatprep.subr.mxu0 0.0
          %2445 = vmatpush1.msra.mxu0 %v1294
          %2446 = vmatprep.subr.mxu0 0.0
          %2447 = vmatpush1.msra.mxu0 %v1295
          %2448 = vmatprep.subr.mxu0 0.0
          %2449 = vmatpush1.msra.mxu0 %v1296
          %2450 = vmatprep.subr.mxu0 0.0
          %2451 = vmatpush1.msra.mxu0 %v1297
          %2452 = vmatprep.subr.mxu0 0.0
          %2453 = vmatpush1.msra.mxu0 %v1298
          %2454 = vmatprep.subr.mxu0 0.0
          %2455 = vmatpush1.msra.mxu0 %v1299
          %2456 = vmatprep.subr.mxu0 0.0
          %2457 = vmatpush1.msra.mxu0 %v1300
          %2458 = vmatprep.subr.mxu0 0.0
          %2459 = vmatpush1.msra.mxu0 %v1301
          %2460 = vmatprep.subr.mxu0 0.0
          %2461 = vmatpush1.msra.mxu0 %v1302
          %2462 = vmatprep.subr.mxu0 0.0
          %2463 = vmatpush1.msra.mxu0 %v1303
          %2464 = vmatprep.subr.mxu0 0.0
          %2465 = vmatpush1.msra.mxu0 %v1304
          %2466 = vmatprep.subr.mxu0 0.0
          %2467 = vmatpush1.msra.mxu0 0.0
          %2468 = vmatprep.subr.mxu0 0.0
          %2469 = vmatpush1.msra.mxu0 0.0
          %2470 = vmatprep.subr.mxu0 0.0
          %2471 = vmatpush1.msra.mxu0 0.0
          %2472 = vmatprep.subr.mxu0 0.0
          %2473 = vmatpush1.msra.mxu0 0.0
          %2474 = vmatprep.subr.mxu0 0.0
          %2475 = vmatpush1.msra.mxu0 0.0
          %2476 = vmatprep.subr.mxu0 0.0
          %2477 = vmatpush1.msra.mxu0 0.0
          %2478 = vmatprep.subr.mxu0 0.0
          %2479 = vmatpush1.msra.mxu0 0.0
          %2480 = vmatprep.subr.mxu0 0.0
          %2481 = vmatpush1.msra.mxu0 0.0
          %2482 = vmatprep.subr.mxu0 0.0
          %2483 = vmatpush1.msra.mxu0 0.0
          %2484 = vmatprep.subr.mxu0 0.0
          %2485 = vmatpush1.msra.mxu0 0.0
          %2486 = vmatprep.subr.mxu0 0.0
          %2487 = vmatpush1.msra.mxu0 0.0
          %2488 = vmatprep.subr.mxu0 0.0
          %2489 = vmatpush1.msra.mxu0 0.0
          %2490 = vmatprep.subr.mxu0 0.0
          %2491 = vmatpush1.msra.mxu0 0.0
          %2492 = vmatprep.subr.mxu0 0.0
          %2493 = vmatpush1.msra.mxu0 0.0
          %2494 = vmatprep.subr.mxu0 0.0
          %2495 = vmatpush1.msra.mxu0 0.0
          %2496 = vmatprep.subr.mxu0 0.0
          %2497 = vmatpush1.msra.mxu0 0.0
          %2498 = vmatprep.mubr.f32.mxu0 0.0
          %2499 = vmatmul.mubr.f32.gmra.mrb[0].mxu0 %v2433
          %v2500 = vpop.f32.mrb[0].mxu0
          %v2501 = vadd.f32 0.0, %v2500
          %v2502 = vpop.f32.mrb[0].mxu0
          %2503 = vdwg.mxu0
          %v2505 = vsel %vm1383, %v2501, 0
          %2507 = vmatprep.subr.mxu0 0.0
          %2508 = vmatpush1.msra.mxu0 %v1288
          %2509 = vmatprep.subr.mxu0 0.0
          %2510 = vmatpush1.msra.mxu0 0.0
          %2511 = vmatprep.subr.mxu0 0.0
          %2512 = vmatpush1.msra.mxu0 0.0
          %2513 = vmatprep.subr.mxu0 0.0
          %2514 = vmatpush1.msra.mxu0 0.0
          %2515 = vmatprep.subr.mxu0 0.0
          %2516 = vmatpush1.msra.mxu0 0.0
          %2517 = vmatprep.subr.mxu0 0.0
          %2518 = vmatpush1.msra.mxu0 0.0
          %2519 = vmatprep.subr.mxu0 0.0
          %2520 = vmatpush1.msra.mxu0 0.0
          %2521 = vmatprep.subr.mxu0 0.0
          %2522 = vmatpush1.msra.mxu0 0.0
          %2523 = vmatprep.subr.mxu0 0.0
          %2524 = vmatpush1.msra.mxu0 0.0
          %2525 = vmatprep.subr.mxu0 0.0
          %2526 = vmatpush1.msra.mxu0 0.0
          %2527 = vmatprep.subr.mxu0 0.0
          %2528 = vmatpush1.msra.mxu0 0.0
          %2529 = vmatprep.subr.mxu0 0.0
          %2530 = vmatpush1.msra.mxu0 0.0
          %2531 = vmatprep.subr.mxu0 0.0
          %2532 = vmatpush1.msra.mxu0 0.0
          %2533 = vmatprep.subr.mxu0 0.0
          %2534 = vmatpush1.msra.mxu0 0.0
          %2535 = vmatprep.subr.mxu0 0.0
          %2536 = vmatpush1.msra.mxu0 0.0
          %2537 = vmatprep.subr.mxu0 0.0
          %2538 = vmatpush1.msra.mxu0 0.0
          %2539 = vmatprep.subr.mxu0 0.0
          %2540 = vmatpush1.msra.mxu0 0.0
          %2541 = vmatprep.subr.mxu0 0.0
          %2542 = vmatpush1.msra.mxu0 0.0
          %2543 = vmatprep.subr.mxu0 0.0
          %2544 = vmatpush1.msra.mxu0 0.0
          %2545 = vmatprep.subr.mxu0 0.0
          %2546 = vmatpush1.msra.mxu0 0.0
          %2547 = vmatprep.subr.mxu0 0.0
          %2548 = vmatpush1.msra.mxu0 0.0
          %2549 = vmatprep.subr.mxu0 0.0
          %2550 = vmatpush1.msra.mxu0 0.0
          %2551 = vmatprep.subr.mxu0 0.0
          %2552 = vmatpush1.msra.mxu0 0.0
          %2553 = vmatprep.subr.mxu0 0.0
          %2554 = vmatpush1.msra.mxu0 0.0
          %2555 = vmatprep.subr.mxu0 0.0
          %2556 = vmatpush1.msra.mxu0 0.0
          %2557 = vmatprep.subr.mxu0 0.0
          %2558 = vmatpush1.msra.mxu0 0.0
          %2559 = vmatprep.subr.mxu0 0.0
          %2560 = vmatpush1.msra.mxu0 0.0
          %2561 = vmatprep.subr.mxu0 0.0
          %2562 = vmatpush1.msra.mxu0 0.0
          %2563 = vmatprep.subr.mxu0 0.0
          %2564 = vmatpush1.msra.mxu0 0.0
          %2565 = vmatprep.subr.mxu0 0.0
          %2566 = vmatpush1.msra.mxu0 0.0
          %2567 = vmatprep.subr.mxu0 0.0
          %2568 = vmatpush1.msra.mxu0 0.0
          %2569 = vmatprep.subr.mxu0 0.0
          %2570 = vmatpush1.msra.mxu0 0.0
          %2571 = vmatprep.mubr.f32.mxu0 0.0
          %2572 = vmatmul.mubr.f32.gmra.mrb[0].mxu0 %v2505
          %v2573 = vpop.f32.mrb[0].mxu0
          %v2574 = vadd.f32 0.0, %v2573
          %v2575 = vpop.f32.mrb[0].mxu0
          %2576 = vdwg.mxu0
          %v2577 = vadd.f32 %v2574, 1.0
          %v2578 = vrcp.pop %v2577
          %v2579 = vmul.f32 %v2574, %v2578
          %v2580 = vmul.f32 %v2430, %v2579
          %v2581 = vrsqrt.pop %v2574
          %v2582 = vmul.f32 %v2574, %v2581
          %vm2583 = vcmp.eq.f32.partialorder %v2574, inf
          %v2584 = vsel %vm2583, %v2574, %v2582
          %vm2585 = vcmp.eq.f32.partialorder %v2574, 0.0
          %v2586 = vand.u32 %v2574, 2147483648
          %v2587 = vsel %vm2585, %v2586, %v2584
          %v2588 = vadd.f32 %v2587, 1e-08
          %v2589 = vrcp.pop %v2588
          %v2590 = vmul.f32 %v2580, %v2589
          %v2591 = vmul.f32 %v2590, %v2590
          %2592 = vmatprep.subr.mxu0 0.0
          %2593 = vmatpush1.msra.mxu0 %v1289
          %2594 = vmatprep.subr.mxu0 0.0
          %2595 = vmatpush1.msra.mxu0 %v1290
          %2596 = vmatprep.subr.mxu0 0.0
          %2597 = vmatpush1.msra.mxu0 %v1291
          %2598 = vmatprep.subr.mxu0 0.0
          %2599 = vmatpush1.msra.mxu0 %v1292
          %2600 = vmatprep.subr.mxu0 0.0
          %2601 = vmatpush1.msra.mxu0 %v1293
          %2602 = vmatprep.subr.mxu0 0.0
          %2603 = vmatpush1.msra.mxu0 %v1294
          %2604 = vmatprep.subr.mxu0 0.0
          %2605 = vmatpush1.msra.mxu0 %v1295
          %2606 = vmatprep.subr.mxu0 0.0
          %2607 = vmatpush1.msra.mxu0 %v1296
          %2608 = vmatprep.subr.mxu0 0.0
          %2609 = vmatpush1.msra.mxu0 %v1297
          %2610 = vmatprep.subr.mxu0 0.0
          %2611 = vmatpush1.msra.mxu0 %v1298
          %2612 = vmatprep.subr.mxu0 0.0
          %2613 = vmatpush1.msra.mxu0 %v1299
          %2614 = vmatprep.subr.mxu0 0.0
          %2615 = vmatpush1.msra.mxu0 %v1300
          %2616 = vmatprep.subr.mxu0 0.0
          %2617 = vmatpush1.msra.mxu0 %v1301
          %2618 = vmatprep.subr.mxu0 0.0
          %2619 = vmatpush1.msra.mxu0 %v1302
          %2620 = vmatprep.subr.mxu0 0.0
          %2621 = vmatpush1.msra.mxu0 %v1303
          %2622 = vmatprep.subr.mxu0 0.0
          %2623 = vmatpush1.msra.mxu0 %v1304
          %2624 = vmatprep.subr.mxu0 0.0
          %2625 = vmatpush1.msra.mxu0 0.0
          %2626 = vmatprep.subr.mxu0 0.0
          %2627 = vmatpush1.msra.mxu0 0.0
          %2628 = vmatprep.subr.mxu0 0.0
          %2629 = vmatpush1.msra.mxu0 0.0
          %2630 = vmatprep.subr.mxu0 0.0
          %2631 = vmatpush1.msra.mxu0 0.0
          %2632 = vmatprep.subr.mxu0 0.0
          %2633 = vmatpush1.msra.mxu0 0.0
          %2634 = vmatprep.subr.mxu0 0.0
          %2635 = vmatpush1.msra.mxu0 0.0
          %2636 = vmatprep.subr.mxu0 0.0
          %2637 = vmatpush1.msra.mxu0 0.0
          %2638 = vmatprep.subr.mxu0 0.0
          %2639 = vmatpush1.msra.mxu0 0.0
          %2640 = vmatprep.subr.mxu0 0.0
          %2641 = vmatpush1.msra.mxu0 0.0
          %2642 = vmatprep.subr.mxu0 0.0
          %2643 = vmatpush1.msra.mxu0 0.0
          %2644 = vmatprep.subr.mxu0 0.0
          %2645 = vmatpush1.msra.mxu0 0.0
          %2646 = vmatprep.subr.mxu0 0.0
          %2647 = vmatpush1.msra.mxu0 0.0
          %2648 = vmatprep.subr.mxu0 0.0
          %2649 = vmatpush1.msra.mxu0 0.0
          %2650 = vmatprep.subr.mxu0 0.0
          %2651 = vmatpush1.msra.mxu0 0.0
          %2652 = vmatprep.subr.mxu0 0.0
          %2653 = vmatpush1.msra.mxu0 0.0
          %2654 = vmatprep.subr.mxu0 0.0
          %2655 = vmatpush1.msra.mxu0 0.0
          %2656 = vmatprep.mubr.f32.mxu0 0.0
          %2657 = vmatmul.mubr.f32.gmra.mrb[0].mxu0 %v2591
          %v2658 = vpop.f32.mrb[0].mxu0
          %v2659 = vadd.f32 0.0, %v2658
          %v2660 = vpop.f32.mrb[0].mxu0
          %2661 = vdwg.mxu0
          %v2662 = vrsqrt.pop %v2659
          %v2663 = vmul.f32 %v2659, %v2662
          %vm2664 = vcmp.eq.f32.partialorder %v2659, inf
          %v2665 = vsel %vm2664, %v2659, %v2663
          %vm2666 = vcmp.eq.f32.partialorder %v2659, 0.0
          %v2667 = vand.u32 %v2659, 2147483648
          %v2668 = vsel %vm2666, %v2667, %v2665
          %vm2669 = vcmask 58368
          %2670 = vst.msk [vmem:[#allocation4] sm:$0x3] %vm2669, %v2668
        $region56: #{tpu_custom_call.1} parent=47 // pred_fallthru
          _
        // Predicated region
        $region57: #{tpu_custom_call.1} parent=47 // pred_check
          %p2671 = pneg %p194
        $region58: #{tpu_custom_call.1} parent=47 // pred_check_branch
          %2673 = sbr.rel (%p2671) target = $region60
        $region59: #{tpu_custom_call.1} parent=47 // pred_region
          %s2675 = ssub.s32 32, 32
          %2676 = vsyncadd [#allocation5], %s2675
          %s2678 = sshll.u32 [#allocation4], 4
          %s2679 = int_to_ptr.vmem [resolvable:$true] %s2678
          %2681 = dma.vmem_to_hbm [thread:$0]  %s2679, 32, %s7, [#allocation5]
        $region60: #{tpu_custom_call.1} parent=47 // pred_fallthru
          _
        // Predicated region
        $region61: #{tpu_custom_call.1} parent=47 // pred_check
          %p2682 = pneg %p194
        $region62: #{tpu_custom_call.1} parent=47 // pred_check_branch
          %2684 = sbr.rel (%p2682) target = $region64
        $region63: #{tpu_custom_call.1} parent=47 // pred_region
          %2685 = dma.done [#allocation5], 32
        $region64: #{tpu_custom_call.1} parent=47 // pred_fallthru
          _
      $region48: #{tpu_custom_call.1} parent=5 // pred_fallthru
        _
      %p2686 = scmp.le.s32.totalorder 2, %s14
      // Predicated region
      $region65: #{tpu_custom_call.1} parent=5 // pred_check
        %p2687 = pneg %p2686
      $region66: #{tpu_custom_call.1} parent=5 // pred_check_branch
        %2689 = sbr.rel (%p2687) target = $region68
      $region67: #{tpu_custom_call.1} parent=5 // pred_region
        %s2690 = ssub.s32 %s14, 2
      $region68: #{tpu_custom_call.1} parent=5 // pred_fallthru
        _
    $region6: #{tpu_custom_call.1} parent=1 // loop_footer
      %s18 = sadd.s32 1, %s14
    $region7: #{tpu_custom_call.1} parent=1 // loop_footer_branch
      %13 = sbr.rel target = $region3
    $region8: #{tpu_custom_call.1} parent=1 // loop_exit
      _
    %2691 = vsyncpa [#allocation5], 1
    %s2692 = scalar_lea.sflag [#allocation5], 1
    %2693 = vsyncpa %s2692, 1

</llo_original>
